<compile_context>
chip_gen: v7x
topology: tpu7x:2x2x1
jax: 0.10.0
libtpu: 0.0.40
codegen_flags: <defaults>
</compile_context>

<pallas_src>
import functools

import jax
import jax.numpy as jnp
from jax.experimental import pallas as pl
from jax.experimental.pallas import tpu as pltpu


def _round_up(x, m):
    return ((x + m - 1) // m) * m


@functools.lru_cache(maxsize=None)
def _vmem_limit_bytes():
    """Generation-aware scoped-VMEM limit: ~3/4 of physical VMEM, capped at 96 MiB.

    v5e/v6e (128 MiB physical) -> 96 MiB; v7x (64 MiB physical) -> 48 MiB.
    Falls back to a v7x-safe 48 MiB if the query is unavailable.
    """
    try:
        phys = int(pltpu.get_tpu_info().vmem_capacity_bytes)
    except Exception:
        phys = 64 * 1024 * 1024
    return max(32 * 1024 * 1024, min(phys * 3 // 4, 96 * 1024 * 1024))


# ----------------------------------------------------------------------------- kernels
def _encoder_kernel(x_ref, wb_ref, bb_ref, w1_ref, b1_ref, w2_ref, b2_ref,
                    out_ref, acc_ref):
    """Encoder: uint8 pixels -> backbone Linear (tiled over F) -> [Linear, ReLU, Linear]
    head -> L2 normalize (dim=1).  Grid = (encoder, M-tile, F-contraction-tile).

    The uint8 -> [0,1] normalization is linear, so the hot loop multiplies raw 0..255
    values (exact in bf16) on the MXU and the 1/255 scale is applied once to the f32
    accumulator in the finalize step.
    """
    kk = pl.program_id(2)

    @pl.when(kk == 0)
    def _():
        acc_ref[...] = jnp.zeros_like(acc_ref)

    # TODO(synk): exact `uint8_normalize` definition not given; assuming x / 255.0
    # (a per-channel mean/std affine would instead be folded into wb/bb).
    x = x_ref[0].astype(jnp.int32).astype(jnp.float32).astype(jnp.bfloat16)  # raw 0..255
    acc_ref[...] += jnp.dot(x, wb_ref[0], preferred_element_type=jnp.float32)  # (tm, Dm)

    @pl.when(kk == pl.num_programs(2) - 1)
    def _():
        h = acc_ref[...] * (1.0 / 255.0) + bb_ref[0]                      # (tm, Dm)
        h = jnp.dot(h.astype(jnp.bfloat16), w1_ref[0],
                    preferred_element_type=jnp.float32) + b1_ref[0]       # (tm, Dm)
        h = jnp.maximum(h, 0.0)                                           # ReLU
        z = jnp.dot(h.astype(jnp.bfloat16), w2_ref[0],
                    preferred_element_type=jnp.float32) + b2_ref[0]       # (tm, D)
        # torch.nn.functional.normalize(z, dim=1): z / max(||z||_2, 1e-12)
        sumsq = jnp.sum(z * z, axis=1, keepdims=True)
        inv = jax.lax.rsqrt(jnp.maximum(sumsq, 1e-24))                    # EUP rsqrt
        out_ref[0] = (z * inv).astype(out_ref.dtype)


def _moco_logits_kernel(q_ref, queue_ref, lneg_ref, *, inv_t):
    """l_neg = (q @ queue[:, tile]) / T.  Queue stored (dim, K): plain NN matmul,
    no per-step transpose of the queue tile; output tile is lane-dense bf16."""
    lneg_ref[...] = (jnp.dot(q_ref[...], queue_ref[...],
                             preferred_element_type=jnp.float32) * inv_t
                     ).astype(lneg_ref.dtype)


# ----------------------------------------------------------------------------- tiling
def _choose_encoder_tiles(n, f, dm, d, vmem_budget):
    """Pick (n_pad, tm, f_pad, tk, single_buffer_weights) under a VMEM budget."""
    # Single-buffer the large grid-invariant weights only when they actually cost VMEM
    # (w1 bf16 >= 2 MiB, i.e. realistic dim_mlp); one exposed DMA per encoder flip.
    single_buf = (dm * dm * 2) >= (2 << 20)

    def vmem_cost(tm, tk):
        inv_mult = 1 if single_buf else 2
        c = 2 * tm * tk                            # x tile (uint8), double buffered
        c += 2 * tk * dm * 2                       # wb tile (bf16), double buffered
        c += inv_mult * (dm * dm + dm * d) * 2     # w1 + w2 (bf16)
        c += 2 * (2 * dm + d) * 4                  # biases (f32), double buffered
        c += tm * dm * 4                           # f32 accumulator scratch
        c += 2 * tm * d * 4                        # output tile (f32), double buffered
        return c

    if n <= 256:
        tm_cands = [_round_up(n, 32)]              # uint8 sublane packing: 32-row align
    else:
        tm_cands = [512, 256]                      # larger tm -> less wb re-streaming

    f128 = _round_up(f, 128)
    tk_cands = [c for c in (2048, 1024, 512, 256, 128) if c <= f128] or [f128]

    for tm in tm_cands:
        for tk in tk_cands:
            if vmem_cost(tm, tk) <= vmem_budget:
                return _round_up(n, tm), tm, _round_up(f, tk), tk, single_buf
    tm, tk = tm_cands[-1], tk_cands[-1]
    return _round_up(n, tm), tm, _round_up(f, tk), tk, single_buf


# ----------------------------------------------------------------------------- wrappers
def encoders_forward(x_u8_stacked, kp, *, tm, tk, single_buffer_weights):
    """Run BOTH encoders (stacked on a leading size-2 axis) in one pallas_call.

    x_u8_stacked: (2, Np, Fp) uint8, zero padded.
    kp: dict of stacked params: wb/w1/w2 in bf16, bb/b1/b2 in f32.
    """
    e_dim, n_pad, f_pad = x_u8_stacked.shape
    dm = kp["w1"].shape[-1]
    d = kp["w2"].shape[-1]
    grid = (e_dim, n_pad // tm, f_pad // tk)

    def inv_spec(shape):
        # Blocks that only change when the encoder axis flips.
        if single_buffer_weights:
            return pl.BlockSpec(shape, lambda e, i, k: (e, 0, 0),
                                pipeline_mode=pl.Buffered(1))
        return pl.BlockSpec(shape, lambda e, i, k: (e, 0, 0))

    in_specs = [
        pl.BlockSpec((1, tm, tk), lambda e, i, k: (e, i, k)),   # x tile (uint8)
        pl.BlockSpec((1, tk, dm), lambda e, i, k: (e, k, 0)),   # wb tile (streamed over F)
        pl.BlockSpec((1, 1, dm), lambda e, i, k: (e, 0, 0)),    # bb
        inv_spec((1, dm, dm)),                                  # w1
        pl.BlockSpec((1, 1, dm), lambda e, i, k: (e, 0, 0)),    # b1
        inv_spec((1, dm, d)),                                   # w2
        pl.BlockSpec((1, 1, d), lambda e, i, k: (e, 0, 0)),     # b2
    ]
    out_specs = pl.BlockSpec((1, tm, d), lambda e, i, k: (e, i, 0))

    return pl.pallas_call(
        _encoder_kernel,
        out_shape=jax.ShapeDtypeStruct((e_dim, n_pad, d), jnp.float32),
        grid_spec=pltpu.PrefetchScalarGridSpec(
            num_scalar_prefetch=0,
            grid=grid,
            in_specs=in_specs,
            out_specs=out_specs,
            scratch_shapes=[pltpu.VMEM((tm, dm), jnp.float32)],
        ),
        compiler_params=pltpu.CompilerParams(
            dimension_semantics=("parallel", "parallel", "arbitrary"),
            vmem_limit_bytes=_vmem_limit_bytes()),
    )(x_u8_stacked, kp["wb"], kp["bb"], kp["w1"], kp["b1"], kp["w2"], kp["b2"])


def moco_logits(q, queue_dk, temperature):
    """l_neg = q @ queue / T with queue stored (dim, K) in bf16, streamed in K-tiles
    over a 'parallel' grid axis.  Output stays bf16 (halves the dominant N*K write)."""
    n, d = q.shape
    kq = queue_dk.shape[1]

    # Largest 128-multiple tile dividing K while keeping >= 2 tiles (so the parallel
    # axis can split across v7x's two TensorCores); else the whole K.
    tkq = kq
    for cand in (4096, 2048, 1024, 512, 256, 128):
        if kq % cand == 0 and kq // cand >= 2:
            tkq = cand
            break
    n_k_tiles = kq // tkq

    np16 = _round_up(n, 16)  # bf16 sublane packing
    qp = jnp.zeros((np16, d), jnp.bfloat16).at[:n].set(q.astype(jnp.bfloat16))

    queue_spec = pl.BlockSpec((d, tkq), lambda j: (0, j))
    if n_k_tiles >= 3:
        # Deeper pipelining on the (memory-bound) queue stream for large K.
        queue_spec = pl.BlockSpec((d, tkq), lambda j: (0, j),
                                  pipeline_mode=pl.Buffered(3))

    kernel = functools.partial(_moco_logits_kernel, inv_t=float(1.0 / temperature))
    lneg = pl.pallas_call(
        kernel,
        out_shape=jax.ShapeDtypeStruct((np16, kq), jnp.bfloat16),
        grid_spec=pltpu.PrefetchScalarGridSpec(
            num_scalar_prefetch=0,
            grid=(n_k_tiles,),
            in_specs=[pl.BlockSpec((np16, d), lambda j: (0, 0)), queue_spec],
            out_specs=pl.BlockSpec((np16, tkq), lambda j: (0, j)),
        ),
        compiler_params=pltpu.CompilerParams(
            dimension_semantics=("parallel",),
            vmem_limit_bytes=_vmem_limit_bytes()),
    )(qp, queue_dk)
    return lneg[:n]


# ----------------------------------------------------------------------------- glue
def init_params(key, in_features, dim_mlp, dim):
    ks = jax.random.split(key, 3)
    scale = 0.02
    return {
        "wb": scale * jax.random.normal(ks[0], (in_features, dim_mlp), jnp.float32),
        "bb": jnp.zeros((1, dim_mlp), jnp.float32),
        "w1": scale * jax.random.normal(ks[1], (dim_mlp, dim_mlp), jnp.float32),
        "b1": jnp.zeros((1, dim_mlp), jnp.float32),
        "w2": scale * jax.random.normal(ks[2], (dim_mlp, dim), jnp.float32),
        "b2": jnp.zeros((1, dim), jnp.float32),
    }


def _flatten_pad_u8(im, n_pad, f_pad):
    n = im.shape[0]
    x = im.reshape(n, -1)
    f = x.shape[1]
    return jnp.pad(x, ((0, n_pad - n), (0, f_pad - f)))


def _stack_params_for_kernel(params_q, params_k, f_pad):
    """Stack q/k params on a leading axis of 2; weights -> bf16 for the MXU,
    biases stay f32. Backbone weight is zero-padded along F to match x padding."""
    def pad_f(w):
        return jnp.pad(w, ((0, f_pad - w.shape[0]), (0, 0)))

    def stack(name, dtype, pad=False):
        a, b = params_q[name], params_k[name]
        if pad:
            a, b = pad_f(a), pad_f(b)
        return jnp.stack([a, b]).astype(dtype)

    return {
        "wb": stack("wb", jnp.bfloat16, pad=True),
        "bb": stack("bb", jnp.float32),
        "w1": stack("w1", jnp.bfloat16),
        "b1": stack("b1", jnp.float32),
        "w2": stack("w2", jnp.bfloat16),
        "b2": stack("b2", jnp.float32),
    }


def moco_forward(im_q, im_k, params_q, params_k, queue_dk, queue_ptr,
                 m, m0, K, T, shuffle_key):
    """Full MoCo.forward semantics on a single device.

    Returns (logits, labels, new_params_k, new_queue, new_queue_ptr, new_m).
    Logits are bf16 (l_neg is written bf16 straight from the kernel; upcast at the
    loss if f32 is needed).
    """
    n, c, h, w = im_q.shape
    f = c * h * w
    dm = params_q["w1"].shape[-1]
    d = params_q["w2"].shape[-1]

    # --- momentum update of key encoder (no_grad, f32 master params) -----------------
    new_params_k = jax.tree_util.tree_map(
        lambda pk, pq: pk * m + pq * (1.0 - m), params_k, params_q)

    # --- batch shuffle / unshuffle (single device: all_gather is identity) -----------
    # TODO(synk): hvd.allgather / broadcast_object are cross-host collectives; on a
    # single device they reduce to identity, so the shuffle is local.
    idx_shuffle = jax.random.permutation(shuffle_key, n)
    idx_unshuffle = jnp.argsort(idx_shuffle)
    im_k_shuf = im_k[idx_shuffle]

    # --- VMEM-budget-aware tiling ------------------------------------------------------
    n_pad, tm, f_pad, tk, single_buf = _choose_encoder_tiles(
        n, f, dm, d, vmem_budget=int(_vmem_limit_bytes() * 0.8))

    # --- both encoders in one Pallas call (grid axis 0 = {q-encoder, k-encoder}) -------
    xq = _flatten_pad_u8(im_q, n_pad, f_pad)
    xk = _flatten_pad_u8(im_k_shuf, n_pad, f_pad)
    x_stacked = jnp.stack([xq, xk])                        # (2, n_pad, f_pad) uint8
    kp = _stack_params_for_kernel(params_q, new_params_k, f_pad)
    feats = encoders_forward(x_stacked, kp, tm=tm, tk=tk,
                             single_buffer_weights=single_buf)  # (2, n_pad, dim) f32

    q = feats[0, :n]
    k = feats[1, :n][idx_unshuffle]                        # undo batch shuffle

    # --- contrastive logits -------------------------------------------------------------
    # l_pos is a tiny N x D elementwise reduce: keep it in XLA (no 1-lane masked store,
    # no constant-index output block sitting on a parallel grid axis).
    l_pos = (jnp.sum(q * k, axis=1, keepdims=True) * (1.0 / T)).astype(jnp.bfloat16)
    l_neg = moco_logits(q, queue_dk, T)                    # (N, K) bf16
    logits = jnp.concatenate([l_pos, l_neg], axis=1)       # (N, 1+K) bf16
    labels = jnp.zeros((n,), dtype=jnp.int32)              # torch.long -> int32 on TPU

    # --- dequeue & enqueue (queue stored (dim, K) as in the reference; column write) ----
    batch_size = n
    new_m = m0 ** (batch_size / 256.0)
    assert K % batch_size == 0
    new_queue = jax.lax.dynamic_update_slice(
        queue_dk, k.T.astype(queue_dk.dtype), (0, queue_ptr))
    new_queue_ptr = (queue_ptr + batch_size) % K

    return logits, labels, new_params_k, new_queue, new_queue_ptr, new_m


# ----------------------------------------------------------------------------- main
if __name__ == "__main__":
    key = jax.random.PRNGKey(0)

    # Small synthetic shapes consistent with the module (MXU-friendly hidden width)
    N, C, H, W = 2, 4, 16, 16        # batch of "images", NCHW
    dim = 128                        # MoCo feature dim
    dim_mlp = 128                    # encoder fc hidden dim (>=128 lanes for the MXU)
    K = 256                          # queue size (K % N == 0)
    T = 0.2
    m0 = 0.999

    k_imq, k_imk, k_par, k_queue, k_shuf = jax.random.split(key, 5)

    # uint8 inputs (normalization is fused into the encoder kernel)
    im_q = jax.random.randint(k_imq, (N, C, H, W), 0, 256, dtype=jnp.int32).astype(jnp.uint8)
    im_k = jax.random.randint(k_imk, (N, C, H, W), 0, 256, dtype=jnp.int32).astype(jnp.uint8)

    # encoder_q params; encoder_k initialized as an exact copy (as in __init__)
    params_q = init_params(k_par, C * H * W, dim_mlp, dim)
    params_k = jax.tree_util.tree_map(lambda p: p, params_q)

    # queue: randn(dim, K) normalized along dim=0 (reference layout), stored bf16
    # (bf16 storage halves the HBM bytes of the dominant q @ queue stream).
    queue = jax.random.normal(k_queue, (dim, K), jnp.float32)
    queue = queue * jax.lax.rsqrt(
        jnp.maximum(jnp.sum(queue * queue, axis=0, keepdims=True), 1e-24))
    queue = queue.astype(jnp.bfloat16)
    queue_ptr = 0
    m = m0

    logits, labels, params_k, queue, queue_ptr, m = moco_forward(
        im_q, im_k, params_q, params_k, queue, queue_ptr, m, m0, K, T, k_shuf)

    logits = jax.block_until_ready(logits)
    labels = jax.block_until_ready(labels)
    queue = jax.block_until_ready(queue)

    assert logits.shape == (N, 1 + K), logits.shape
    assert labels.shape == (N,), labels.shape
    assert bool(jnp.all(jnp.isfinite(logits.astype(jnp.float32))))

    print("KERNEL_OK")
</pallas_src>

<mosaic_0001>
module attributes {stable_mosaic.version = 11 : i64} {
  func.func @_encoder_kernel(%arg0: i32, %arg1: i32, %arg2: i32, %arg3: memref<1x32x1024xi8, #tpu.memory_space<vmem>>, %arg4: memref<1x1024x128xbf16, #tpu.memory_space<vmem>>, %arg5: memref<1x1x128xf32, #tpu.memory_space<vmem>>, %arg6: memref<1x128x128xbf16, #tpu.memory_space<vmem>>, %arg7: memref<1x1x128xf32, #tpu.memory_space<vmem>>, %arg8: memref<1x128x128xbf16, #tpu.memory_space<vmem>>, %arg9: memref<1x1x128xf32, #tpu.memory_space<vmem>>, %arg10: memref<1x32x128xf32, #tpu.memory_space<vmem>>, %arg11: memref<32x128xf32, #tpu.memory_space<vmem>>) attributes {dimension_semantics = [#tpu.dimension_semantics<parallel>, #tpu.dimension_semantics<parallel>, #tpu.dimension_semantics<arbitrary>], iteration_bounds = array<i64: 2, 1, 1>, scalar_prefetch = 0 : i64, scratch_operands = 1 : i64, tpu.core_type = #tpu.core_type<tc>, window_params = [{transform_indices = @transform_0, window_bounds = array<i64: 1, 32, 1024>}, {transform_indices = @transform_1, window_bounds = array<i64: 1, 1024, 128>}, {transform_indices = @transform_2, window_bounds = array<i64: 1, 1, 128>}, {transform_indices = @transform_3, window_bounds = array<i64: 1, 128, 128>}, {transform_indices = @transform_4, window_bounds = array<i64: 1, 1, 128>}, {transform_indices = @transform_5, window_bounds = array<i64: 1, 128, 128>}, {transform_indices = @transform_6, window_bounds = array<i64: 1, 1, 128>}, {transform_indices = @transform_7, window_bounds = array<i64: 1, 32, 128>}]} {
    %c0_i32 = arith.constant 0 : i32
    %0 = arith.cmpi eq, %arg2, %c0_i32 : i32
    %1 = arith.extui %0 : i1 to i32
    %c0_i32_0 = arith.constant 0 : i32
    %2 = arith.cmpi ne, %1, %c0_i32_0 : i32
    scf.if %2 {
      %cst_12 = arith.constant 0.000000e+00 : f32
      %17 = vector.broadcast %cst_12 : f32 to vector<32x128xf32>
      %c0_13 = arith.constant 0 : index
      %c0_14 = arith.constant 0 : index
      %18 = vector.load %arg11[%c0_13, %c0_14] : memref<32x128xf32, #tpu.memory_space<vmem>>, vector<32x128xf32>
      tpu.vector_store %arg11[%c0_13, %c0_14], %17 {strides = array<i32>} : memref<32x128xf32, #tpu.memory_space<vmem>>, vector<32x128xf32>,
    } else {
    }
    %c0 = arith.constant 0 : index
    %c0_1 = arith.constant 0 : index
    %c0_2 = arith.constant 0 : index
    %3 = vector.load %arg3[%c0, %c0_1, %c0_2] : memref<1x32x1024xi8, #tpu.memory_space<vmem>>, vector<1x32x1024xi8>
    %4 = vector.shape_cast %3 : vector<1x32x1024xi8> to vector<32x1024xi8>
    %5 = arith.extui %4 : vector<32x1024xi8> to vector<32x1024xi32>
    %6 = arith.sitofp %5 : vector<32x1024xi32> to vector<32x1024xf32>
    %7 = arith.truncf %6 : vector<32x1024xf32> to vector<32x1024xbf16>
    %c0_3 = arith.constant 0 : index
    %c0_4 = arith.constant 0 : index
    %8 = vector.load %arg11[%c0_3, %c0_4] : memref<32x128xf32, #tpu.memory_space<vmem>>, vector<32x128xf32>
    %c0_5 = arith.constant 0 : index
    %c0_6 = arith.constant 0 : index
    %c0_7 = arith.constant 0 : index
    %9 = vector.load %arg4[%c0_5, %c0_6, %c0_7] : memref<1x1024x128xbf16, #tpu.memory_space<vmem>>, vector<1x1024x128xbf16>
    %10 = vector.shape_cast %9 : vector<1x1024x128xbf16> to vector<1024x128xbf16>
    %cst = arith.constant dense<0.000000e+00> : vector<32x128xf32>
    %11 = tpu.matmul %7, %10, %cst {dimension_numbers = #tpu.dot_dimension_numbers<[1], [0], [0], [1], [0, 0, 1, 1], [], []>} : vector<32x1024xbf16>, vector<1024x128xbf16>, vector<32x128xf32> -> vector<32x128xf32>
    %12 = arith.addf %8, %11 : vector<32x128xf32>
    %c0_8 = arith.constant 0 : index
    %c0_9 = arith.constant 0 : index
    %13 = vector.load %arg11[%c0_8, %c0_9] : memref<32x128xf32, #tpu.memory_space<vmem>>, vector<32x128xf32>
    tpu.vector_store %arg11[%c0_8, %c0_9], %12 {strides = array<i32>} : memref<32x128xf32, #tpu.memory_space<vmem>>, vector<32x128xf32>,
    %c0_i32_10 = arith.constant 0 : i32
    %14 = arith.cmpi eq, %arg2, %c0_i32_10 : i32
    %15 = arith.extui %14 : i1 to i32
    %c0_i32_11 = arith.constant 0 : i32
    %16 = arith.cmpi ne, %15, %c0_i32_11 : i32
    scf.if %16 {
      %c0_12 = arith.constant 0 : index
      %c0_13 = arith.constant 0 : index
      %17 = vector.load %arg11[%c0_12, %c0_13] : memref<32x128xf32, #tpu.memory_space<vmem>>, vector<32x128xf32>
      %cst_14 = arith.constant 0.00392156886 : f32
      %18 = vector.broadcast %cst_14 : f32 to vector<32x128xf32>
      %19 = arith.mulf %17, %18 : vector<32x128xf32>
      %c0_15 = arith.constant 0 : index
      %c0_16 = arith.constant 0 : index
      %c0_17 = arith.constant 0 : index
      %20 = vector.load %arg5[%c0_15, %c0_16, %c0_17] : memref<1x1x128xf32, #tpu.memory_space<vmem>>, vector<1x1x128xf32>
      %21 = vector.shape_cast %20 : vector<1x1x128xf32> to vector<1x128xf32>
      %22 = vector.broadcast %21 : vector<1x128xf32> to vector<32x128xf32>
      %23 = arith.addf %19, %22 : vector<32x128xf32>
      %24 = arith.truncf %23 : vector<32x128xf32> to vector<32x128xbf16>
      %c0_18 = arith.constant 0 : index
      %c0_19 = arith.constant 0 : index
      %c0_20 = arith.constant 0 : index
      %25 = vector.load %arg6[%c0_18, %c0_19, %c0_20] : memref<1x128x128xbf16, #tpu.memory_space<vmem>>, vector<1x128x128xbf16>
      %26 = vector.shape_cast %25 : vector<1x128x128xbf16> to vector<128x128xbf16>
      %cst_21 = arith.constant dense<0.000000e+00> : vector<32x128xf32>
      %27 = tpu.matmul %24, %26, %cst_21 {dimension_numbers = #tpu.dot_dimension_numbers<[1], [0], [0], [1], [0, 0, 1, 1], [], []>} : vector<32x128xbf16>, vector<128x128xbf16>, vector<32x128xf32> -> vector<32x128xf32>
      %c0_22 = arith.constant 0 : index
      %c0_23 = arith.constant 0 : index
      %c0_24 = arith.constant 0 : index
      %28 = vector.load %arg7[%c0_22, %c0_23, %c0_24] : memref<1x1x128xf32, #tpu.memory_space<vmem>>, vector<1x1x128xf32>
      %29 = vector.shape_cast %28 : vector<1x1x128xf32> to vector<1x128xf32>
      %30 = vector.broadcast %29 : vector<1x128xf32> to vector<32x128xf32>
      %31 = arith.addf %27, %30 : vector<32x128xf32>
      %cst_25 = arith.constant 0.000000e+00 : f32
      %32 = vector.broadcast %cst_25 : f32 to vector<32x128xf32>
      %33 = arith.maximumf %31, %32 : vector<32x128xf32>
      %34 = arith.truncf %33 : vector<32x128xf32> to vector<32x128xbf16>
      %c0_26 = arith.constant 0 : index
      %c0_27 = arith.constant 0 : index
      %c0_28 = arith.constant 0 : index
      %35 = vector.load %arg8[%c0_26, %c0_27, %c0_28] : memref<1x128x128xbf16, #tpu.memory_space<vmem>>, vector<1x128x128xbf16>
      %36 = vector.shape_cast %35 : vector<1x128x128xbf16> to vector<128x128xbf16>
      %cst_29 = arith.constant dense<0.000000e+00> : vector<32x128xf32>
      %37 = tpu.matmul %34, %36, %cst_29 {dimension_numbers = #tpu.dot_dimension_numbers<[1], [0], [0], [1], [0, 0, 1, 1], [], []>} : vector<32x128xbf16>, vector<128x128xbf16>, vector<32x128xf32> -> vector<32x128xf32>
      %c0_30 = arith.constant 0 : index
      %c0_31 = arith.constant 0 : index
      %c0_32 = arith.constant 0 : index
      %38 = vector.load %arg9[%c0_30, %c0_31, %c0_32] : memref<1x1x128xf32, #tpu.memory_space<vmem>>, vector<1x1x128xf32>
      %39 = vector.shape_cast %38 : vector<1x1x128xf32> to vector<1x128xf32>
      %40 = vector.broadcast %39 : vector<1x128xf32> to vector<32x128xf32>
      %41 = arith.addf %37, %40 : vector<32x128xf32>
      %42 = arith.mulf %41, %41 : vector<32x128xf32>
      %cst_33 = arith.constant dense<0.000000e+00> : vector<32xf32>
      %43 = vector.multi_reduction <add>, %42, %cst_33 [1] : vector<32x128xf32> to vector<32xf32>
      %44 = vector.shape_cast %43 : vector<32xf32> to vector<32x1xf32>
      %cst_34 = arith.constant 1.000000e-24 : f32
      %45 = vector.broadcast %cst_34 : f32 to vector<32x1xf32>
      %46 = arith.maximumf %44, %45 : vector<32x1xf32>
      %47 = math.rsqrt %46 : vector<32x1xf32>
      %48 = vector.broadcast %47 : vector<32x1xf32> to vector<32x128xf32>
      %49 = arith.mulf %41, %48 : vector<32x128xf32>
      %c0_35 = arith.constant 0 : index
      %c0_36 = arith.constant 0 : index
      %c0_37 = arith.constant 0 : index
      %50 = vector.load %arg10[%c0_35, %c0_36, %c0_37] : memref<1x32x128xf32, #tpu.memory_space<vmem>>, vector<1x32x128xf32>
      %51 = vector.shape_cast %50 : vector<1x32x128xf32> to vector<32x128xf32>
      %52 = vector.shape_cast %49 : vector<32x128xf32> to vector<1x32x128xf32>
      tpu.vector_store %arg10[%c0_35, %c0_36, %c0_37], %52 {strides = array<i32>} : memref<1x32x128xf32, #tpu.memory_space<vmem>>, vector<1x32x128xf32>,
    } else {
    }
    return
  }
  func.func @transform_0(%arg0: i32, %arg1: i32, %arg2: i32) -> (i32, i32, i32) {
    %c0_i32 = arith.constant 0 : i32
    return %arg0, %arg1, %arg2 : i32, i32, i32
  }
  func.func @transform_1(%arg0: i32, %arg1: i32, %arg2: i32) -> (i32, i32, i32) {
    %c0_i32 = arith.constant 0 : i32
    %c0_i32_0 = arith.constant 0 : i32
    return %arg0, %arg2, %c0_i32 : i32, i32, i32
  }
  func.func @transform_2(%arg0: i32, %arg1: i32, %arg2: i32) -> (i32, i32, i32) {
    %c0_i32 = arith.constant 0 : i32
    %c0_i32_0 = arith.constant 0 : i32
    %c0_i32_1 = arith.constant 0 : i32
    return %arg0, %c0_i32, %c0_i32_0 : i32, i32, i32
  }
  func.func @transform_3(%arg0: i32, %arg1: i32, %arg2: i32) -> (i32, i32, i32) {
    %c0_i32 = arith.constant 0 : i32
    %c0_i32_0 = arith.constant 0 : i32
    %c0_i32_1 = arith.constant 0 : i32
    return %arg0, %c0_i32, %c0_i32_0 : i32, i32, i32
  }
  func.func @transform_4(%arg0: i32, %arg1: i32, %arg2: i32) -> (i32, i32, i32) {
    %c0_i32 = arith.constant 0 : i32
    %c0_i32_0 = arith.constant 0 : i32
    %c0_i32_1 = arith.constant 0 : i32
    return %arg0, %c0_i32, %c0_i32_0 : i32, i32, i32
  }
  func.func @transform_5(%arg0: i32, %arg1: i32, %arg2: i32) -> (i32, i32, i32) {
    %c0_i32 = arith.constant 0 : i32
    %c0_i32_0 = arith.constant 0 : i32
    %c0_i32_1 = arith.constant 0 : i32
    return %arg0, %c0_i32, %c0_i32_0 : i32, i32, i32
  }
  func.func @transform_6(%arg0: i32, %arg1: i32, %arg2: i32) -> (i32, i32, i32) {
    %c0_i32 = arith.constant 0 : i32
    %c0_i32_0 = arith.constant 0 : i32
    %c0_i32_1 = arith.constant 0 : i32
    return %arg0, %c0_i32, %c0_i32_0 : i32, i32, i32
  }
  func.func @transform_7(%arg0: i32, %arg1: i32, %arg2: i32) -> (i32, i32, i32) {
    %c0_i32 = arith.constant 0 : i32
    %c0_i32_0 = arith.constant 0 : i32
    return %arg0, %arg1, %c0_i32 : i32, i32, i32
  }
}

</mosaic_0001>

<llo_original>
// kernel: tpu_custom_call.1
$region0: #{tpu_custom_call.1}
  #allocation0 [shape = 'u32[]', space=smem, size = 0x4, offset = 0x4, fixed_abs, tag = 'smem constant byte address 0x4 - core index']
  #allocation1 [shape = 'u32[144,128]{1,0:T(1,128)}', space=vmem, size = 0x12000, scoped, tag = 'internal scratch']
  #allocation2 [shape = 'f32[32,128]{1,0:T(8,128)}', space=vmem, size = 0x4000, scoped, tag = 'scratch operand']
  %s0 = inlined_call_operand.hbm [shape: u8[2,32,1024], index: 0, kind: input, shape index: {}]
  %s1 = inlined_call_operand.hbm [shape: bf16[2,1024,128], index: 1, kind: input, shape index: {}]
  %s2 = inlined_call_operand.vmem [shape: f32[2,1,128], index: 2, kind: input, shape index: {}]
  %s3 = inlined_call_operand.hbm [shape: bf16[2,128,128], index: 3, kind: input, shape index: {}]
  %s4 = inlined_call_operand.vmem [shape: f32[2,1,128], index: 4, kind: input, shape index: {}]
  %s5 = inlined_call_operand.hbm [shape: bf16[2,128,128], index: 5, kind: input, shape index: {}]
  %s6 = inlined_call_operand.vmem [shape: f32[2,1,128], index: 6, kind: input, shape index: {}]
  %s7 = inlined_call_operand.hbm [shape: f32[2,32,128], index: 7, kind: output, shape index: {}]
  %s8 = sld [smem:[#allocation0]]
  $region85: #{tpu_custom_call.1} parent=0
    _
  %s10 = ssub.s32 1, %s8
  %s11 = scalar_select 0, %s10, %s8
  $region1: #{tpu_custom_call.1} parent=0
    #allocation3 [shape = 'u8[65536]{0}', space=vmem, size = 0x10000, scoped, tag = 'input window, operand 0']
    #allocation4 [shape = 's32[2]{0}', space=sflag, size = 0x8, scoped, tag = 'scoped memory for tpu_custom_call.1']
    #allocation5 [shape = 's32[2]{0}', space=sflag, size = 0x8, scoped, tag = 'scoped memory for tpu_custom_call.1']
    #allocation6 [shape = 'u8[524288]{0}', space=vmem, size = 0x80000, scoped, tag = 'input window, operand 1']
    #allocation7 [shape = 's32[2]{0}', space=sflag, size = 0x8, scoped, tag = 'scoped memory for tpu_custom_call.1']
    #allocation8 [shape = 'u8[65536]{0}', space=vmem, size = 0x10000, scoped, tag = 'input window, operand 3']
    #allocation9 [shape = 'u8[65536]{0}', space=vmem, size = 0x10000, scoped, tag = 'input window, operand 5']
    #allocation10 [shape = 's32[2]{0}', space=sflag, size = 0x8, scoped, tag = 'scoped memory for tpu_custom_call.1']
    #allocation11 [shape = 'u8[32768]{0}', space=vmem, size = 0x8000, scoped, tag = 'output window, operand 0']
    %12 = vsyncpa [#allocation4], 0
    %s13 = scalar_lea.sflag [#allocation4], 1
    %14 = vsyncpa %s13, 0
    %15 = vsyncpa [#allocation7], 0
    %s16 = scalar_lea.sflag [#allocation7], 1
    %17 = vsyncpa %s16, 0
    %18 = vsyncpa [#allocation10], 0
    %s19 = scalar_lea.sflag [#allocation10], 1
    %20 = vsyncpa %s19, 0
    %21 = vsyncpa [#allocation5], 0
    %s22 = scalar_lea.sflag [#allocation5], 1
    %23 = vsyncpa %s22, 0
    loop: start=0, step=1, limit=4
    $region2: #{tpu_custom_call.1} parent=1 // loop_pre_header
      _
    $region3: #{tpu_custom_call.1} parent=1 // loop_header
      %s25 = sphi 0, %s29
      %p26 = scmp.ge.s32.totalorder %s25, 4
      %s32 = sphi 0, %s51
      %s33 = sphi 0, %s47
      %s34 = sphi 0, %s43
      %s35 = sphi 0, %s32
      %s36 = sphi 0, %s33
      %s37 = sphi 0, %s34
      %s38 = sphi 0, %s35
      %s39 = sphi 0, %s36
      %s40 = sphi 0, %s37
      %s58 = sphi 0, %s60
      %s61 = sphi 0, %s58
      %s62 = sphi 0, %s61
      %s78 = sphi 0, %s62
      %s86 = sphi 0, %s88
      %s89 = sphi 0, %s86
      %s90 = sphi 0, %s89
      %s106 = sphi 0, %s90
      %s112 = sphi 0, %s114
      %s115 = sphi 0, %s112
      %s116 = sphi 0, %s115
      %s132 = sphi 0, %s116
      %s138 = sphi 0, %s140
      %s141 = sphi 0, %s138
      %s142 = sphi 0, %s141
      %s158 = sphi 0, %s142
      %s164 = sphi 0, %s166
      %s167 = sphi 0, %s164
      %s168 = sphi 0, %s167
      %s184 = sphi 0, %s168
      %s190 = sphi 0, %s192
      %s193 = sphi 0, %s190
      %s194 = sphi 0, %s193
      %s210 = sphi 0, %s194
      %s216 = sphi 0, %s218
      %s219 = sphi 0, %s216
      %s220 = sphi 0, %s219
      %s236 = sphi 0, %s220
      %s244 = sphi 0, %s246
      %s247 = sphi 0, %s244
      %s248 = sphi 0, %s247
      %s264 = sphi 0, %s248
    $region4: #{tpu_custom_call.1} parent=1 // loop_header_branch
      %28 = sbr.rel (%p26) target = $region8
    $region5: #{tpu_custom_call.1} parent=1 // loop_body
      %s30 = ssub.s32 %s25, 1
      %s31 = ssub.s32 %s25, 2
      %s41 = sadd.s32 1, %s34
      %p42 = scmp.ge.s32.totalorder %s41, 1
      %s43 = scalar_select %p42, 0, %s41
      %s44 = sadd.s32 1, %s33
      %s45 = scalar_select %p42, %s44, %s33
      %p46 = scmp.ge.s32.totalorder %s45, 1
      %s47 = scalar_select %p46, 0, %s45
      %s48 = sadd.s32 1, %s32
      %s49 = scalar_select %p46, %s48, %s32
      %p50 = scmp.ge.s32.totalorder %s49, 2
      %s51 = scalar_select %p50, 0, %s49
      %s52 = ssub.s32 %s32, %s51
      %s53 = ssub.s32 %s33, %s47
      %s54 = sor.u32 %s52, %s53
      %s55 = ssub.s32 %s34, %s43
      %s56 = sor.u32 %s54, %s55
      %p57 = scmp.eq.s32.totalorder %s56, 0
      %s59 = sadd.s32 %s58, 1
      %s60 = scalar_select %p57, %s58, %s59
      %p63 = pneg %p57
      %p64 = scmp.eq.s32.totalorder %s25, 1
      %p65 = por %p63, %p64
      %p66 = scmp.ne.s32.totalorder %s58, %s61
      %p67 = scmp.eq.s32.totalorder %s25, 0
      %p68 = por %p66, %p67
      %p69 = scmp.ne.s32.totalorder %s58, %s61
      %p70 = scmp.eq.s32.totalorder %s30, 1
      %p71 = por %p69, %p70
      %p72 = scmp.ne.s32.totalorder %s61, %s62
      %p73 = scmp.eq.s32.totalorder %s30, 0
      %p74 = por %p72, %p73
      %p75 = scmp.ne.s32.totalorder %s61, %s62
      %p76 = scmp.eq.s32.totalorder %s31, 1
      %p77 = por %p75, %p76
      %p79 = scmp.ne.s32.totalorder %s62, %s78
      %p80 = scmp.eq.s32.totalorder %s31, 0
      %p81 = por %p79, %p80
      %s82 = ssub.s32 %s32, %s51
      %s83 = ssub.s32 %s34, %s43
      %s84 = sor.u32 %s82, %s83
      %p85 = scmp.eq.s32.totalorder %s84, 0
      %s87 = sadd.s32 %s86, 1
      %s88 = scalar_select %p85, %s86, %s87
      %p91 = pneg %p85
      %p92 = scmp.eq.s32.totalorder %s25, 1
      %p93 = por %p91, %p92
      %p94 = scmp.ne.s32.totalorder %s86, %s89
      %p95 = scmp.eq.s32.totalorder %s25, 0
      %p96 = por %p94, %p95
      %p97 = scmp.ne.s32.totalorder %s86, %s89
      %p98 = scmp.eq.s32.totalorder %s30, 1
      %p99 = por %p97, %p98
      %p100 = scmp.ne.s32.totalorder %s89, %s90
      %p101 = scmp.eq.s32.totalorder %s30, 0
      %p102 = por %p100, %p101
      %p103 = scmp.ne.s32.totalorder %s89, %s90
      %p104 = scmp.eq.s32.totalorder %s31, 1
      %p105 = por %p103, %p104
      %p107 = scmp.ne.s32.totalorder %s90, %s106
      %p108 = scmp.eq.s32.totalorder %s31, 0
      %p109 = por %p107, %p108
      %s110 = ssub.s32 %s32, %s51
      %p111 = scmp.eq.s32.totalorder %s110, 0
      %s113 = sadd.s32 %s112, 1
      %s114 = scalar_select %p111, %s112, %s113
      %p117 = pneg %p111
      %p118 = scmp.eq.s32.totalorder %s25, 1
      %p119 = por %p117, %p118
      %p120 = scmp.ne.s32.totalorder %s112, %s115
      %p121 = scmp.eq.s32.totalorder %s25, 0
      %p122 = por %p120, %p121
      %p123 = scmp.ne.s32.totalorder %s112, %s115
      %p124 = scmp.eq.s32.totalorder %s30, 1
      %p125 = por %p123, %p124
      %p126 = scmp.ne.s32.totalorder %s115, %s116
      %p127 = scmp.eq.s32.totalorder %s30, 0
      %p128 = por %p126, %p127
      %p129 = scmp.ne.s32.totalorder %s115, %s116
      %p130 = scmp.eq.s32.totalorder %s31, 1
      %p131 = por %p129, %p130
      %p133 = scmp.ne.s32.totalorder %s116, %s132
      %p134 = scmp.eq.s32.totalorder %s31, 0
      %p135 = por %p133, %p134
      %s136 = ssub.s32 %s32, %s51
      %p137 = scmp.eq.s32.totalorder %s136, 0
      %s139 = sadd.s32 %s138, 1
      %s140 = scalar_select %p137, %s138, %s139
      %p143 = pneg %p137
      %p144 = scmp.eq.s32.totalorder %s25, 1
      %p145 = por %p143, %p144
      %p146 = scmp.ne.s32.totalorder %s138, %s141
      %p147 = scmp.eq.s32.totalorder %s25, 0
      %p148 = por %p146, %p147
      %p149 = scmp.ne.s32.totalorder %s138, %s141
      %p150 = scmp.eq.s32.totalorder %s30, 1
      %p151 = por %p149, %p150
      %p152 = scmp.ne.s32.totalorder %s141, %s142
      %p153 = scmp.eq.s32.totalorder %s30, 0
      %p154 = por %p152, %p153
      %p155 = scmp.ne.s32.totalorder %s141, %s142
      %p156 = scmp.eq.s32.totalorder %s31, 1
      %p157 = por %p155, %p156
      %p159 = scmp.ne.s32.totalorder %s142, %s158
      %p160 = scmp.eq.s32.totalorder %s31, 0
      %p161 = por %p159, %p160
      %s162 = ssub.s32 %s32, %s51
      %p163 = scmp.eq.s32.totalorder %s162, 0
      %s165 = sadd.s32 %s164, 1
      %s166 = scalar_select %p163, %s164, %s165
      %p169 = pneg %p163
      %p170 = scmp.eq.s32.totalorder %s25, 1
      %p171 = por %p169, %p170
      %p172 = scmp.ne.s32.totalorder %s164, %s167
      %p173 = scmp.eq.s32.totalorder %s25, 0
      %p174 = por %p172, %p173
      %p175 = scmp.ne.s32.totalorder %s164, %s167
      %p176 = scmp.eq.s32.totalorder %s30, 1
      %p177 = por %p175, %p176
      %p178 = scmp.ne.s32.totalorder %s167, %s168
      %p179 = scmp.eq.s32.totalorder %s30, 0
      %p180 = por %p178, %p179
      %p181 = scmp.ne.s32.totalorder %s167, %s168
      %p182 = scmp.eq.s32.totalorder %s31, 1
      %p183 = por %p181, %p182
      %p185 = scmp.ne.s32.totalorder %s168, %s184
      %p186 = scmp.eq.s32.totalorder %s31, 0
      %p187 = por %p185, %p186
      %s188 = ssub.s32 %s32, %s51
      %p189 = scmp.eq.s32.totalorder %s188, 0
      %s191 = sadd.s32 %s190, 1
      %s192 = scalar_select %p189, %s190, %s191
      %p195 = pneg %p189
      %p196 = scmp.eq.s32.totalorder %s25, 1
      %p197 = por %p195, %p196
      %p198 = scmp.ne.s32.totalorder %s190, %s193
      %p199 = scmp.eq.s32.totalorder %s25, 0
      %p200 = por %p198, %p199
      %p201 = scmp.ne.s32.totalorder %s190, %s193
      %p202 = scmp.eq.s32.totalorder %s30, 1
      %p203 = por %p201, %p202
      %p204 = scmp.ne.s32.totalorder %s193, %s194
      %p205 = scmp.eq.s32.totalorder %s30, 0
      %p206 = por %p204, %p205
      %p207 = scmp.ne.s32.totalorder %s193, %s194
      %p208 = scmp.eq.s32.totalorder %s31, 1
      %p209 = por %p207, %p208
      %p211 = scmp.ne.s32.totalorder %s194, %s210
      %p212 = scmp.eq.s32.totalorder %s31, 0
      %p213 = por %p211, %p212
      %s214 = ssub.s32 %s32, %s51
      %p215 = scmp.eq.s32.totalorder %s214, 0
      %s217 = sadd.s32 %s216, 1
      %s218 = scalar_select %p215, %s216, %s217
      %p221 = pneg %p215
      %p222 = scmp.eq.s32.totalorder %s25, 1
      %p223 = por %p221, %p222
      %p224 = scmp.ne.s32.totalorder %s216, %s219
      %p225 = scmp.eq.s32.totalorder %s25, 0
      %p226 = por %p224, %p225
      %p227 = scmp.ne.s32.totalorder %s216, %s219
      %p228 = scmp.eq.s32.totalorder %s30, 1
      %p229 = por %p227, %p228
      %p230 = scmp.ne.s32.totalorder %s219, %s220
      %p231 = scmp.eq.s32.totalorder %s30, 0
      %p232 = por %p230, %p231
      %p233 = scmp.ne.s32.totalorder %s219, %s220
      %p234 = scmp.eq.s32.totalorder %s31, 1
      %p235 = por %p233, %p234
      %p237 = scmp.ne.s32.totalorder %s220, %s236
      %p238 = scmp.eq.s32.totalorder %s31, 0
      %p239 = por %p237, %p238
      %s240 = ssub.s32 %s32, %s51
      %s241 = ssub.s32 %s33, %s47
      %s242 = sor.u32 %s240, %s241
      %p243 = scmp.eq.s32.totalorder %s242, 0
      %s245 = sadd.s32 %s244, 1
      %s246 = scalar_select %p243, %s244, %s245
      %p249 = pneg %p243
      %p250 = scmp.eq.s32.totalorder %s25, 1
      %p251 = por %p249, %p250
      %p252 = scmp.ne.s32.totalorder %s244, %s247
      %p253 = scmp.eq.s32.totalorder %s25, 0
      %p254 = por %p252, %p253
      %p255 = scmp.ne.s32.totalorder %s244, %s247
      %p256 = scmp.eq.s32.totalorder %s30, 1
      %p257 = por %p255, %p256
      %p258 = scmp.ne.s32.totalorder %s247, %s248
      %p259 = scmp.eq.s32.totalorder %s30, 0
      %p260 = por %p258, %p259
      %p261 = scmp.ne.s32.totalorder %s247, %s248
      %p262 = scmp.eq.s32.totalorder %s31, 1
      %p263 = por %p261, %p262
      %p265 = scmp.ne.s32.totalorder %s248, %s264
      %p266 = scmp.eq.s32.totalorder %s31, 0
      %p267 = por %p265, %p266
      %p268 = scmp.le.s32.totalorder 1, %s25
      %p269 = scmp.lt.s32.totalorder %s25, 3
      %p270 = pnand %p268, %p269
      %p271 = pneg %p270
      // Predicated region
      $region9: #{tpu_custom_call.1} parent=5 // pred_check
        _
      $region10: #{tpu_custom_call.1} parent=5 // pred_check_branch
        %273 = sbr.rel (%p270) target = $region12
      $region11: #{tpu_custom_call.1} parent=5 // pred_region
        %s274 = ssub.s32 %s25, 1
      $region12: #{tpu_custom_call.1} parent=5 // pred_fallthru
        _
      %p275 = scmp.lt.s32.totalorder %s25, 2
      // Predicated region
      $region13: #{tpu_custom_call.1} parent=5 // pred_check
        %p276 = pneg %p275
      $region14: #{tpu_custom_call.1} parent=5 // pred_check_branch
        %278 = sbr.rel (%p276) target = $region16
      $region15: #{tpu_custom_call.1} parent=5 // pred_region
        // Predicated region
        $region17: #{tpu_custom_call.1} parent=15 // pred_check
          %p279 = pneg %p68
        $region18: #{tpu_custom_call.1} parent=15 // pred_check_branch
          %281 = sbr.rel (%p279) target = $region20
        $region19: #{tpu_custom_call.1} parent=15 // pred_region
          %s282 = sand.u32 %s58, 1
          %s283 = scalar_lea.sflag [#allocation4], %s282
          %s284 = sand.u32 %s58, 1
          %s285 = smul.addr %s284, 64
          %s286 = scalar_lea.vmem [#allocation3], %s285
          %s287 = smul.u32 8, %s34
          %s289 = ssub.s32 1024, 1024
          %290 = vsyncadd %s283, %s289
          %s291 = smul.addr %s33, 8
          %s292 = sadd.s32 %s287, %s291
          %s293 = smul.addr %s32, 8
          %s294 = sadd.s32 %s292, %s293
          %s295 = smul.addr %s294, 128
          %s296 = scalar_lea.hbm %s0, %s295
          %s298 = sshll.u32 %s286, 4
          %s299 = int_to_ptr.vmem [resolvable:$true] %s298
          %301 = dma.hbm_to_vmem [thread:$0]  %s296, 1024, %s299, %s283
        $region20: #{tpu_custom_call.1} parent=15 // pred_fallthru
          _
        // Predicated region
        $region21: #{tpu_custom_call.1} parent=15 // pred_check
          %p302 = pneg %p96
        $region22: #{tpu_custom_call.1} parent=15 // pred_check_branch
          %304 = sbr.rel (%p302) target = $region24
        $region23: #{tpu_custom_call.1} parent=15 // pred_region
          %s305 = sand.u32 %s25, 1
          %s306 = scalar_lea.sflag [#allocation7], %s305
          %s307 = sand.u32 %s86, 1
          %s308 = smul.addr %s307, 512
          %s309 = scalar_lea.vmem [#allocation6], %s308
          %s310 = smul.u32 128, %s34
          %s312 = ssub.s32 8192, 8192
          %313 = vsyncadd %s306, %s312
          %s314 = smul.addr %s32, 128
          %s315 = sadd.s32 %s310, %s314
          %s316 = smul.addr %s315, 64
          %s317 = scalar_lea.hbm %s1, %s316
          %s318 = sshll.u32 %s309, 4
          %s319 = int_to_ptr.vmem [resolvable:$true] %s318
          %324 = dma.hbm_to_vmem [thread:$0]  %s317, 8192, %s319, %s306, 64, 64, 4
        $region24: #{tpu_custom_call.1} parent=15 // pred_fallthru
          _
        // Predicated region
        $region25: #{tpu_custom_call.1} parent=15 // pred_check
          %p325 = pneg %p122
        $region26: #{tpu_custom_call.1} parent=15 // pred_check_branch
          %327 = sbr.rel (%p325) target = $region28
        $region27: #{tpu_custom_call.1} parent=15 // pred_region
          %p328 = scmp.lt.s32.totalorder %s32, 1
          %s329 = scalar_select %p328, %s32, 1
          %s330 = scalar_lea.vmem %s2, %s329
        $region28: #{tpu_custom_call.1} parent=15 // pred_fallthru
          _
        // Predicated region
        $region29: #{tpu_custom_call.1} parent=15 // pred_check
          %p331 = pneg %p148
        $region30: #{tpu_custom_call.1} parent=15 // pred_check_branch
          %333 = sbr.rel (%p331) target = $region32
        $region31: #{tpu_custom_call.1} parent=15 // pred_region
          %s334 = sand.u32 %s25, 1
          %s335 = scalar_lea.sflag [#allocation7], %s334
          %s336 = sand.u32 %s138, 1
          %s337 = smul.addr %s336, 64
          %s338 = scalar_lea.vmem [#allocation8], %s337
          %s340 = ssub.s32 1024, 1024
          %341 = vsyncadd %s335, %s340
          %s342 = smul.addr %s32, 16
          %s343 = smul.addr %s342, 64
          %s344 = scalar_lea.hbm %s3, %s343
          %s345 = sshll.u32 %s338, 4
          %s346 = int_to_ptr.vmem [resolvable:$true] %s345
          %351 = dma.hbm_to_vmem [thread:$0]  %s344, 1024, %s346, %s335, 64, 64, 4
        $region32: #{tpu_custom_call.1} parent=15 // pred_fallthru
          _
        // Predicated region
        $region33: #{tpu_custom_call.1} parent=15 // pred_check
          %p352 = pneg %p174
        $region34: #{tpu_custom_call.1} parent=15 // pred_check_branch
          %354 = sbr.rel (%p352) target = $region36
        $region35: #{tpu_custom_call.1} parent=15 // pred_region
          %p355 = scmp.lt.s32.totalorder %s32, 1
          %s356 = scalar_select %p355, %s32, 1
          %s357 = scalar_lea.vmem %s4, %s356
        $region36: #{tpu_custom_call.1} parent=15 // pred_fallthru
          _
        // Predicated region
        $region37: #{tpu_custom_call.1} parent=15 // pred_check
          %p358 = pneg %p200
        $region38: #{tpu_custom_call.1} parent=15 // pred_check_branch
          %360 = sbr.rel (%p358) target = $region40
        $region39: #{tpu_custom_call.1} parent=15 // pred_region
          %s361 = sand.u32 %s190, 1
          %s362 = scalar_lea.sflag [#allocation10], %s361
          %s363 = sand.u32 %s190, 1
          %s364 = smul.addr %s363, 64
          %s365 = scalar_lea.vmem [#allocation9], %s364
          %s367 = ssub.s32 1024, 1024
          %368 = vsyncadd %s362, %s367
          %s369 = smul.addr %s32, 16
          %s370 = smul.addr %s369, 64
          %s371 = scalar_lea.hbm %s5, %s370
          %s372 = sshll.u32 %s365, 4
          %s373 = int_to_ptr.vmem [resolvable:$true] %s372
          %378 = dma.hbm_to_vmem [thread:$0]  %s371, 1024, %s373, %s362, 64, 64, 4
        $region40: #{tpu_custom_call.1} parent=15 // pred_fallthru
          _
        // Predicated region
        $region41: #{tpu_custom_call.1} parent=15 // pred_check
          %p379 = pneg %p226
        $region42: #{tpu_custom_call.1} parent=15 // pred_check_branch
          %381 = sbr.rel (%p379) target = $region44
        $region43: #{tpu_custom_call.1} parent=15 // pred_region
          %p382 = scmp.lt.s32.totalorder %s32, 1
          %s383 = scalar_select %p382, %s32, 1
          %s384 = scalar_lea.vmem %s6, %s383
        $region44: #{tpu_custom_call.1} parent=15 // pred_fallthru
          _
      $region16: #{tpu_custom_call.1} parent=5 // pred_fallthru
        _
      %p385 = scmp.le.s32.totalorder 1, %s25
      %p386 = scmp.lt.s32.totalorder %s25, 3
      %p387 = pnand %p385, %p386
      %p388 = pneg %p387
      // Predicated region
      $region45: #{tpu_custom_call.1} parent=5 // pred_check
        _
      $region46: #{tpu_custom_call.1} parent=5 // pred_check_branch
        %390 = sbr.rel (%p387) target = $region48
      $region47: #{tpu_custom_call.1} parent=5 // pred_region
        %s391 = ssub.s32 %s25, 1
        %s392 = sand.u32 %s61, 1
        %s393 = scalar_lea.sflag [#allocation4], %s392
        %s394 = sand.u32 %s61, 1
        %s395 = smul.addr %s394, 64
        %s396 = scalar_lea.vmem [#allocation3], %s395
        // Predicated region
        $region49: #{tpu_custom_call.1} parent=47 // pred_check
          %p397 = pneg %p74
        $region50: #{tpu_custom_call.1} parent=47 // pred_check_branch
          %399 = sbr.rel (%p397) target = $region52
        $region51: #{tpu_custom_call.1} parent=47 // pred_region
          %400 = dma.done %s393, 1024
        $region52: #{tpu_custom_call.1} parent=47 // pred_fallthru
          _
        %s401 = sand.u32 %s30, 1
        %s402 = scalar_lea.sflag [#allocation7], %s401
        %s403 = sand.u32 %s89, 1
        %s404 = smul.addr %s403, 512
        %s405 = scalar_lea.vmem [#allocation6], %s404
        // Predicated region
        $region53: #{tpu_custom_call.1} parent=47 // pred_check
          %p406 = pneg %p102
        $region54: #{tpu_custom_call.1} parent=47 // pred_check_branch
          %408 = sbr.rel (%p406) target = $region56
        $region55: #{tpu_custom_call.1} parent=47 // pred_region
          %409 = dma.done %s402, 8192
        $region56: #{tpu_custom_call.1} parent=47 // pred_fallthru
          _
        %s410 = sand.u32 %s30, 1
        %s411 = scalar_lea.sflag [#allocation7], %s410
        %s412 = sand.u32 %s141, 1
        %s413 = smul.addr %s412, 64
        %s414 = scalar_lea.vmem [#allocation8], %s413
        // Predicated region
        $region57: #{tpu_custom_call.1} parent=47 // pred_check
          %p415 = pneg %p154
        $region58: #{tpu_custom_call.1} parent=47 // pred_check_branch
          %417 = sbr.rel (%p415) target = $region60
        $region59: #{tpu_custom_call.1} parent=47 // pred_region
          %418 = dma.done %s411, 1024
        $region60: #{tpu_custom_call.1} parent=47 // pred_fallthru
          _
        %s419 = sand.u32 %s193, 1
        %s420 = scalar_lea.sflag [#allocation10], %s419
        %s421 = sand.u32 %s193, 1
        %s422 = smul.addr %s421, 64
        %s423 = scalar_lea.vmem [#allocation9], %s422
        // Predicated region
        $region61: #{tpu_custom_call.1} parent=47 // pred_check
          %p424 = pneg %p206
        $region62: #{tpu_custom_call.1} parent=47 // pred_check_branch
          %426 = sbr.rel (%p424) target = $region64
        $region63: #{tpu_custom_call.1} parent=47 // pred_region
          %427 = dma.done %s420, 1024
        $region64: #{tpu_custom_call.1} parent=47 // pred_fallthru
          _
        %s428 = sand.u32 %s61, 1
        %s429 = scalar_lea.sflag [#allocation4], %s428
        %s430 = sand.u32 %s61, 1
        %s431 = smul.addr %s430, 64
        %s432 = scalar_lea.vmem [#allocation3], %s431
        %p433 = pneg %p74
        %p434 = pneg %p71
        %s435 = sand.u32 %s30, 1
        %s436 = scalar_lea.sflag [#allocation7], %s435
        %s437 = sand.u32 %s89, 1
        %s438 = smul.addr %s437, 512
        %s439 = scalar_lea.vmem [#allocation6], %s438
        %p440 = pneg %p102
        %p441 = pneg %p99
        %p442 = scmp.lt.s32.totalorder %s35, 1
        %s443 = scalar_select %p442, %s35, 1
        %s444 = scalar_lea.vmem %s2, %s443
        %p445 = pneg %p128
        %p446 = pneg %p125
        %s447 = sand.u32 %s30, 1
        %s448 = scalar_lea.sflag [#allocation7], %s447
        %s449 = sand.u32 %s141, 1
        %s450 = smul.addr %s449, 64
        %s451 = scalar_lea.vmem [#allocation8], %s450
        %p452 = pneg %p154
        %p453 = pneg %p151
        %p454 = scmp.lt.s32.totalorder %s35, 1
        %s455 = scalar_select %p454, %s35, 1
        %s456 = scalar_lea.vmem %s4, %s455
        %p457 = pneg %p180
        %p458 = pneg %p177
        %s459 = sand.u32 %s193, 1
        %s460 = scalar_lea.sflag [#allocation10], %s459
        %s461 = sand.u32 %s193, 1
        %s462 = smul.addr %s461, 64
        %s463 = scalar_lea.vmem [#allocation9], %s462
        %p464 = pneg %p206
        %p465 = pneg %p203
        %p466 = scmp.lt.s32.totalorder %s35, 1
        %s467 = scalar_select %p466, %s35, 1
        %s468 = scalar_lea.vmem %s6, %s467
        %p469 = pneg %p232
        %p470 = pneg %p229
        %p471 = pneg %p260
        %p472 = pneg %p257
        %s473 = sand.u32 %s247, 1
        %s474 = scalar_lea.sflag [#allocation5], %s473
        %s475 = sand.u32 %s247, 1
        %s476 = smul.addr %s475, 32
        %s477 = scalar_lea.vmem [#allocation11], %s476
        %s478 = smul.u32 8, %s37
        %s479 = smul.u32 128, %s37
        %p480 = scmp.lt.s32.totalorder %s35, 1
        %s481 = scalar_select %p480, %s35, 1
        %s482 = scalar_lea.vmem %s2, %s481
        %p483 = scmp.lt.s32.totalorder %s35, 1
        %s484 = scalar_select %p483, %s35, 1
        %s485 = scalar_lea.vmem %s4, %s484
        %p486 = scmp.lt.s32.totalorder %s35, 1
        %s487 = scalar_select %p486, %s35, 1
        %s488 = scalar_lea.vmem %s6, %s487
        %s489 = smul.u32 4, %s36
        %p491 = scmp.eq.s32.totalorder %s37, 0
        // Predicated region
        $region65: #{tpu_custom_call.1} parent=47 // pred_check
          %p492 = pneg %p491
        $region66: #{tpu_custom_call.1} parent=47 // pred_check_branch
          %494 = sbr.rel (%p492) target = $region68
        $region67: #{tpu_custom_call.1} parent=47 // pred_region
          %495 = vst [vmem:[#allocation2] sm:$0xff] 0.0
          %496 = vst [vmem:[#allocation2 + $0x8] sm:$0xff] 0.0
          %497 = vst [vmem:[#allocation2 + $0x10] sm:$0xff] 0.0
          %498 = vst [vmem:[#allocation2 + $0x18] sm:$0xff] 0.0
        $region68: #{tpu_custom_call.1} parent=47 // pred_fallthru
          _
        %v499 = vld [vmem:[%s396] sm:$0xff]
        %v500 = vld [vmem:[%s396 + $0x8] sm:$0xff]
        %v501 = vld [vmem:[%s396 + $0x10] sm:$0xff]
        %v502 = vld [vmem:[%s396 + $0x18] sm:$0xff]
        %v503 = vld [vmem:[%s396 + $0x20] sm:$0xff]
        %v504 = vld [vmem:[%s396 + $0x28] sm:$0xff]
        %v505 = vld [vmem:[%s396 + $0x30] sm:$0xff]
        %v506 = vld [vmem:[%s396 + $0x38] sm:$0xff]
        %v507 = vunpack.c.l.u8.bf16 %v499
        %v508 = vunpack.c.l.u8.bf16 %v500
        %v509 = vunpack.c.l.u8.bf16 %v501
        %v510 = vunpack.c.l.u8.bf16 %v502
        %v511 = vunpack.c.l.u8.bf16 %v503
        %v512 = vunpack.c.l.u8.bf16 %v504
        %v513 = vunpack.c.l.u8.bf16 %v505
        %v514 = vunpack.c.l.u8.bf16 %v506
        %v515 = vunpack.c.h.u8.bf16 %v499
        %v516 = vunpack.c.h.u8.bf16 %v500
        %v517 = vunpack.c.h.u8.bf16 %v501
        %v518 = vunpack.c.h.u8.bf16 %v502
        %v519 = vunpack.c.h.u8.bf16 %v503
        %v520 = vunpack.c.h.u8.bf16 %v504
        %v521 = vunpack.c.h.u8.bf16 %v505
        %v522 = vunpack.c.h.u8.bf16 %v506
        %v523 = vld [vmem:[#allocation2] sm:$0xff]
        %v524 = vld [vmem:[#allocation2 + $0x8] sm:$0xff]
        %v525 = vld [vmem:[#allocation2 + $0x10] sm:$0xff]
        %v526 = vld [vmem:[#allocation2 + $0x18] sm:$0xff]
        %v527 = vld [vmem:[%s405] sm:$0xf]
        %v528 = vld [vmem:[%s405 + $0x4] sm:$0xf]
        %v529 = vld [vmem:[%s405 + $0x8] sm:$0xf]
        %v530 = vld [vmem:[%s405 + $0xc] sm:$0xf]
        %v531 = vld [vmem:[%s405 + $0x10] sm:$0xf]
        %v532 = vld [vmem:[%s405 + $0x14] sm:$0xf]
        %v533 = vld [vmem:[%s405 + $0x18] sm:$0xf]
        %v534 = vld [vmem:[%s405 + $0x1c] sm:$0xf]
        %v535 = vld [vmem:[%s405 + $0x20] sm:$0xf]
        %v536 = vld [vmem:[%s405 + $0x24] sm:$0xf]
        %v537 = vld [vmem:[%s405 + $0x28] sm:$0xf]
        %v538 = vld [vmem:[%s405 + $0x2c] sm:$0xf]
        %v539 = vld [vmem:[%s405 + $0x30] sm:$0xf]
        %v540 = vld [vmem:[%s405 + $0x34] sm:$0xf]
        %v541 = vld [vmem:[%s405 + $0x38] sm:$0xf]
        %v542 = vld [vmem:[%s405 + $0x3c] sm:$0xf]
        %v543 = vld [vmem:[%s405 + $0x40] sm:$0xf]
        %v544 = vld [vmem:[%s405 + $0x44] sm:$0xf]
        %v545 = vld [vmem:[%s405 + $0x48] sm:$0xf]
        %v546 = vld [vmem:[%s405 + $0x4c] sm:$0xf]
        %v547 = vld [vmem:[%s405 + $0x50] sm:$0xf]
        %v548 = vld [vmem:[%s405 + $0x54] sm:$0xf]
        %v549 = vld [vmem:[%s405 + $0x58] sm:$0xf]
        %v550 = vld [vmem:[%s405 + $0x5c] sm:$0xf]
        %v551 = vld [vmem:[%s405 + $0x60] sm:$0xf]
        %v552 = vld [vmem:[%s405 + $0x64] sm:$0xf]
        %v553 = vld [vmem:[%s405 + $0x68] sm:$0xf]
        %v554 = vld [vmem:[%s405 + $0x6c] sm:$0xf]
        %v555 = vld [vmem:[%s405 + $0x70] sm:$0xf]
        %v556 = vld [vmem:[%s405 + $0x74] sm:$0xf]
        %v557 = vld [vmem:[%s405 + $0x78] sm:$0xf]
        %v558 = vld [vmem:[%s405 + $0x7c] sm:$0xf]
        %v559 = vld [vmem:[%s405 + $0x80] sm:$0xf]
        %v560 = vld [vmem:[%s405 + $0x84] sm:$0xf]
        %v561 = vld [vmem:[%s405 + $0x88] sm:$0xf]
        %v562 = vld [vmem:[%s405 + $0x8c] sm:$0xf]
        %v563 = vld [vmem:[%s405 + $0x90] sm:$0xf]
        %v564 = vld [vmem:[%s405 + $0x94] sm:$0xf]
        %v565 = vld [vmem:[%s405 + $0x98] sm:$0xf]
        %v566 = vld [vmem:[%s405 + $0x9c] sm:$0xf]
        %v567 = vld [vmem:[%s405 + $0xa0] sm:$0xf]
        %v568 = vld [vmem:[%s405 + $0xa4] sm:$0xf]
        %v569 = vld [vmem:[%s405 + $0xa8] sm:$0xf]
        %v570 = vld [vmem:[%s405 + $0xac] sm:$0xf]
        %v571 = vld [vmem:[%s405 + $0xb0] sm:$0xf]
        %v572 = vld [vmem:[%s405 + $0xb4] sm:$0xf]
        %v573 = vld [vmem:[%s405 + $0xb8] sm:$0xf]
        %v574 = vld [vmem:[%s405 + $0xbc] sm:$0xf]
        %v575 = vld [vmem:[%s405 + $0xc0] sm:$0xf]
        %v576 = vld [vmem:[%s405 + $0xc4] sm:$0xf]
        %v577 = vld [vmem:[%s405 + $0xc8] sm:$0xf]
        %v578 = vld [vmem:[%s405 + $0xcc] sm:$0xf]
        %v579 = vld [vmem:[%s405 + $0xd0] sm:$0xf]
        %v580 = vld [vmem:[%s405 + $0xd4] sm:$0xf]
        %v581 = vld [vmem:[%s405 + $0xd8] sm:$0xf]
        %v582 = vld [vmem:[%s405 + $0xdc] sm:$0xf]
        %v583 = vld [vmem:[%s405 + $0xe0] sm:$0xf]
        %v584 = vld [vmem:[%s405 + $0xe4] sm:$0xf]
        %v585 = vld [vmem:[%s405 + $0xe8] sm:$0xf]
        %v586 = vld [vmem:[%s405 + $0xec] sm:$0xf]
        %v587 = vld [vmem:[%s405 + $0xf0] sm:$0xf]
        %v588 = vld [vmem:[%s405 + $0xf4] sm:$0xf]
        %v589 = vld [vmem:[%s405 + $0xf8] sm:$0xf]
        %v590 = vld [vmem:[%s405 + $0xfc] sm:$0xf]
        %v591 = vld [vmem:[%s405 + $0x100] sm:$0xf]
        %v592 = vld [vmem:[%s405 + $0x104] sm:$0xf]
        %v593 = vld [vmem:[%s405 + $0x108] sm:$0xf]
        %v594 = vld [vmem:[%s405 + $0x10c] sm:$0xf]
        %v595 = vld [vmem:[%s405 + $0x110] sm:$0xf]
        %v596 = vld [vmem:[%s405 + $0x114] sm:$0xf]
        %v597 = vld [vmem:[%s405 + $0x118] sm:$0xf]
        %v598 = vld [vmem:[%s405 + $0x11c] sm:$0xf]
        %v599 = vld [vmem:[%s405 + $0x120] sm:$0xf]
        %v600 = vld [vmem:[%s405 + $0x124] sm:$0xf]
        %v601 = vld [vmem:[%s405 + $0x128] sm:$0xf]
        %v602 = vld [vmem:[%s405 + $0x12c] sm:$0xf]
        %v603 = vld [vmem:[%s405 + $0x130] sm:$0xf]
        %v604 = vld [vmem:[%s405 + $0x134] sm:$0xf]
        %v605 = vld [vmem:[%s405 + $0x138] sm:$0xf]
        %v606 = vld [vmem:[%s405 + $0x13c] sm:$0xf]
        %v607 = vld [vmem:[%s405 + $0x140] sm:$0xf]
        %v608 = vld [vmem:[%s405 + $0x144] sm:$0xf]
        %v609 = vld [vmem:[%s405 + $0x148] sm:$0xf]
        %v610 = vld [vmem:[%s405 + $0x14c] sm:$0xf]
        %v611 = vld [vmem:[%s405 + $0x150] sm:$0xf]
        %v612 = vld [vmem:[%s405 + $0x154] sm:$0xf]
        %v613 = vld [vmem:[%s405 + $0x158] sm:$0xf]
        %v614 = vld [vmem:[%s405 + $0x15c] sm:$0xf]
        %v615 = vld [vmem:[%s405 + $0x160] sm:$0xf]
        %v616 = vld [vmem:[%s405 + $0x164] sm:$0xf]
        %v617 = vld [vmem:[%s405 + $0x168] sm:$0xf]
        %v618 = vld [vmem:[%s405 + $0x16c] sm:$0xf]
        %v619 = vld [vmem:[%s405 + $0x170] sm:$0xf]
        %v620 = vld [vmem:[%s405 + $0x174] sm:$0xf]
        %v621 = vld [vmem:[%s405 + $0x178] sm:$0xf]
        %v622 = vld [vmem:[%s405 + $0x17c] sm:$0xf]
        %v623 = vld [vmem:[%s405 + $0x180] sm:$0xf]
        %v624 = vld [vmem:[%s405 + $0x184] sm:$0xf]
        %v625 = vld [vmem:[%s405 + $0x188] sm:$0xf]
        %v626 = vld [vmem:[%s405 + $0x18c] sm:$0xf]
        %v627 = vld [vmem:[%s405 + $0x190] sm:$0xf]
        %v628 = vld [vmem:[%s405 + $0x194] sm:$0xf]
        %v629 = vld [vmem:[%s405 + $0x198] sm:$0xf]
        %v630 = vld [vmem:[%s405 + $0x19c] sm:$0xf]
        %v631 = vld [vmem:[%s405 + $0x1a0] sm:$0xf]
        %v632 = vld [vmem:[%s405 + $0x1a4] sm:$0xf]
        %v633 = vld [vmem:[%s405 + $0x1a8] sm:$0xf]
        %v634 = vld [vmem:[%s405 + $0x1ac] sm:$0xf]
        %v635 = vld [vmem:[%s405 + $0x1b0] sm:$0xf]
        %v636 = vld [vmem:[%s405 + $0x1b4] sm:$0xf]
        %v637 = vld [vmem:[%s405 + $0x1b8] sm:$0xf]
        %v638 = vld [vmem:[%s405 + $0x1bc] sm:$0xf]
        %v639 = vld [vmem:[%s405 + $0x1c0] sm:$0xf]
        %v640 = vld [vmem:[%s405 + $0x1c4] sm:$0xf]
        %v641 = vld [vmem:[%s405 + $0x1c8] sm:$0xf]
        %v642 = vld [vmem:[%s405 + $0x1cc] sm:$0xf]
        %v643 = vld [vmem:[%s405 + $0x1d0] sm:$0xf]
        %v644 = vld [vmem:[%s405 + $0x1d4] sm:$0xf]
        %v645 = vld [vmem:[%s405 + $0x1d8] sm:$0xf]
        %v646 = vld [vmem:[%s405 + $0x1dc] sm:$0xf]
        %v647 = vld [vmem:[%s405 + $0x1e0] sm:$0xf]
        %v648 = vld [vmem:[%s405 + $0x1e4] sm:$0xf]
        %v649 = vld [vmem:[%s405 + $0x1e8] sm:$0xf]
        %v650 = vld [vmem:[%s405 + $0x1ec] sm:$0xf]
        %v651 = vld [vmem:[%s405 + $0x1f0] sm:$0xf]
        %v652 = vld [vmem:[%s405 + $0x1f4] sm:$0xf]
        %v653 = vld [vmem:[%s405 + $0x1f8] sm:$0xf]
        %v654 = vld [vmem:[%s405 + $0x1fc] sm:$0xf]
        %v783 = vunpack.c.l.b16 %v527
        %v784 = vunpack.c.l.b16 %v528
        %v785 = vunpack.c.l.b16 %v529
        %v786 = vunpack.c.l.b16 %v530
        %v787 = vunpack.c.l.b16 %v531
        %v788 = vunpack.c.l.b16 %v532
        %v789 = vunpack.c.l.b16 %v533
        %v790 = vunpack.c.l.b16 %v534
        %v791 = vunpack.c.l.b16 %v535
        %v792 = vunpack.c.l.b16 %v536
        %v793 = vunpack.c.l.b16 %v537
        %v794 = vunpack.c.l.b16 %v538
        %v795 = vunpack.c.l.b16 %v539
        %v796 = vunpack.c.l.b16 %v540
        %v797 = vunpack.c.l.b16 %v541
        %v798 = vunpack.c.l.b16 %v542
        %v799 = vunpack.c.l.b16 %v543
        %v800 = vunpack.c.l.b16 %v544
        %v801 = vunpack.c.l.b16 %v545
        %v802 = vunpack.c.l.b16 %v546
        %v803 = vunpack.c.l.b16 %v547
        %v804 = vunpack.c.l.b16 %v548
        %v805 = vunpack.c.l.b16 %v549
        %v806 = vunpack.c.l.b16 %v550
        %v807 = vunpack.c.l.b16 %v551
        %v808 = vunpack.c.l.b16 %v552
        %v809 = vunpack.c.l.b16 %v553
        %v810 = vunpack.c.l.b16 %v554
        %v811 = vunpack.c.l.b16 %v555
        %v812 = vunpack.c.l.b16 %v556
        %v813 = vunpack.c.l.b16 %v557
        %v814 = vunpack.c.l.b16 %v558
        %v815 = vunpack.c.l.b16 %v559
        %v816 = vunpack.c.l.b16 %v560
        %v817 = vunpack.c.l.b16 %v561
        %v818 = vunpack.c.l.b16 %v562
        %v819 = vunpack.c.l.b16 %v563
        %v820 = vunpack.c.l.b16 %v564
        %v821 = vunpack.c.l.b16 %v565
        %v822 = vunpack.c.l.b16 %v566
        %v823 = vunpack.c.l.b16 %v567
        %v824 = vunpack.c.l.b16 %v568
        %v825 = vunpack.c.l.b16 %v569
        %v826 = vunpack.c.l.b16 %v570
        %v827 = vunpack.c.l.b16 %v571
        %v828 = vunpack.c.l.b16 %v572
        %v829 = vunpack.c.l.b16 %v573
        %v830 = vunpack.c.l.b16 %v574
        %v831 = vunpack.c.l.b16 %v575
        %v832 = vunpack.c.l.b16 %v576
        %v833 = vunpack.c.l.b16 %v577
        %v834 = vunpack.c.l.b16 %v578
        %v835 = vunpack.c.l.b16 %v579
        %v836 = vunpack.c.l.b16 %v580
        %v837 = vunpack.c.l.b16 %v581
        %v838 = vunpack.c.l.b16 %v582
        %v839 = vunpack.c.l.b16 %v583
        %v840 = vunpack.c.l.b16 %v584
        %v841 = vunpack.c.l.b16 %v585
        %v842 = vunpack.c.l.b16 %v586
        %v843 = vunpack.c.l.b16 %v587
        %v844 = vunpack.c.l.b16 %v588
        %v845 = vunpack.c.l.b16 %v589
        %v846 = vunpack.c.l.b16 %v590
        %v847 = vunpack.c.l.b16 %v591
        %v848 = vunpack.c.l.b16 %v592
        %v849 = vunpack.c.l.b16 %v593
        %v850 = vunpack.c.l.b16 %v594
        %v851 = vunpack.c.l.b16 %v595
        %v852 = vunpack.c.l.b16 %v596
        %v853 = vunpack.c.l.b16 %v597
        %v854 = vunpack.c.l.b16 %v598
        %v855 = vunpack.c.l.b16 %v599
        %v856 = vunpack.c.l.b16 %v600
        %v857 = vunpack.c.l.b16 %v601
        %v858 = vunpack.c.l.b16 %v602
        %v859 = vunpack.c.l.b16 %v603
        %v860 = vunpack.c.l.b16 %v604
        %v861 = vunpack.c.l.b16 %v605
        %v862 = vunpack.c.l.b16 %v606
        %v863 = vunpack.c.l.b16 %v607
        %v864 = vunpack.c.l.b16 %v608
        %v865 = vunpack.c.l.b16 %v609
        %v866 = vunpack.c.l.b16 %v610
        %v867 = vunpack.c.l.b16 %v611
        %v868 = vunpack.c.l.b16 %v612
        %v869 = vunpack.c.l.b16 %v613
        %v870 = vunpack.c.l.b16 %v614
        %v871 = vunpack.c.l.b16 %v615
        %v872 = vunpack.c.l.b16 %v616
        %v873 = vunpack.c.l.b16 %v617
        %v874 = vunpack.c.l.b16 %v618
        %v875 = vunpack.c.l.b16 %v619
        %v876 = vunpack.c.l.b16 %v620
        %v877 = vunpack.c.l.b16 %v621
        %v878 = vunpack.c.l.b16 %v622
        %v879 = vunpack.c.l.b16 %v623
        %v880 = vunpack.c.l.b16 %v624
        %v881 = vunpack.c.l.b16 %v625
        %v882 = vunpack.c.l.b16 %v626
        %v883 = vunpack.c.l.b16 %v627
        %v884 = vunpack.c.l.b16 %v628
        %v885 = vunpack.c.l.b16 %v629
        %v886 = vunpack.c.l.b16 %v630
        %v887 = vunpack.c.l.b16 %v631
        %v888 = vunpack.c.l.b16 %v632
        %v889 = vunpack.c.l.b16 %v633
        %v890 = vunpack.c.l.b16 %v634
        %v891 = vunpack.c.l.b16 %v635
        %v892 = vunpack.c.l.b16 %v636
        %v893 = vunpack.c.l.b16 %v637
        %v894 = vunpack.c.l.b16 %v638
        %v895 = vunpack.c.l.b16 %v639
        %v896 = vunpack.c.l.b16 %v640
        %v897 = vunpack.c.l.b16 %v641
        %v898 = vunpack.c.l.b16 %v642
        %v899 = vunpack.c.l.b16 %v643
        %v900 = vunpack.c.l.b16 %v644
        %v901 = vunpack.c.l.b16 %v645
        %v902 = vunpack.c.l.b16 %v646
        %v903 = vunpack.c.l.b16 %v647
        %v904 = vunpack.c.l.b16 %v648
        %v905 = vunpack.c.l.b16 %v649
        %v906 = vunpack.c.l.b16 %v650
        %v907 = vunpack.c.l.b16 %v651
        %v908 = vunpack.c.l.b16 %v652
        %v909 = vunpack.c.l.b16 %v653
        %v910 = vunpack.c.l.b16 %v654
        %v911 = vpack.c.b16 %v784, %v783
        %v912 = vpack.c.b16 %v786, %v785
        %v913 = vpack.c.b16 %v788, %v787
        %v914 = vpack.c.b16 %v790, %v789
        %v915 = vpack.c.b16 %v792, %v791
        %v916 = vpack.c.b16 %v794, %v793
        %v917 = vpack.c.b16 %v796, %v795
        %v918 = vpack.c.b16 %v798, %v797
        %v919 = vpack.c.b16 %v800, %v799
        %v920 = vpack.c.b16 %v802, %v801
        %v921 = vpack.c.b16 %v804, %v803
        %v922 = vpack.c.b16 %v806, %v805
        %v923 = vpack.c.b16 %v808, %v807
        %v924 = vpack.c.b16 %v810, %v809
        %v925 = vpack.c.b16 %v812, %v811
        %v926 = vpack.c.b16 %v814, %v813
        %v927 = vpack.c.b16 %v816, %v815
        %v928 = vpack.c.b16 %v818, %v817
        %v929 = vpack.c.b16 %v820, %v819
        %v930 = vpack.c.b16 %v822, %v821
        %v931 = vpack.c.b16 %v824, %v823
        %v932 = vpack.c.b16 %v826, %v825
        %v933 = vpack.c.b16 %v828, %v827
        %v934 = vpack.c.b16 %v830, %v829
        %v935 = vpack.c.b16 %v832, %v831
        %v936 = vpack.c.b16 %v834, %v833
        %v937 = vpack.c.b16 %v836, %v835
        %v938 = vpack.c.b16 %v838, %v837
        %v939 = vpack.c.b16 %v840, %v839
        %v940 = vpack.c.b16 %v842, %v841
        %v941 = vpack.c.b16 %v844, %v843
        %v942 = vpack.c.b16 %v846, %v845
        %v943 = vpack.c.b16 %v848, %v847
        %v944 = vpack.c.b16 %v850, %v849
        %v945 = vpack.c.b16 %v852, %v851
        %v946 = vpack.c.b16 %v854, %v853
        %v947 = vpack.c.b16 %v856, %v855
        %v948 = vpack.c.b16 %v858, %v857
        %v949 = vpack.c.b16 %v860, %v859
        %v950 = vpack.c.b16 %v862, %v861
        %v951 = vpack.c.b16 %v864, %v863
        %v952 = vpack.c.b16 %v866, %v865
        %v953 = vpack.c.b16 %v868, %v867
        %v954 = vpack.c.b16 %v870, %v869
        %v955 = vpack.c.b16 %v872, %v871
        %v956 = vpack.c.b16 %v874, %v873
        %v957 = vpack.c.b16 %v876, %v875
        %v958 = vpack.c.b16 %v878, %v877
        %v959 = vpack.c.b16 %v880, %v879
        %v960 = vpack.c.b16 %v882, %v881
        %v961 = vpack.c.b16 %v884, %v883
        %v962 = vpack.c.b16 %v886, %v885
        %v963 = vpack.c.b16 %v888, %v887
        %v964 = vpack.c.b16 %v890, %v889
        %v965 = vpack.c.b16 %v892, %v891
        %v966 = vpack.c.b16 %v894, %v893
        %v967 = vpack.c.b16 %v896, %v895
        %v968 = vpack.c.b16 %v898, %v897
        %v969 = vpack.c.b16 %v900, %v899
        %v970 = vpack.c.b16 %v902, %v901
        %v971 = vpack.c.b16 %v904, %v903
        %v972 = vpack.c.b16 %v906, %v905
        %v973 = vpack.c.b16 %v908, %v907
        %v974 = vpack.c.b16 %v910, %v909
        %1039 = vmatprep.subr.bf16.mxu0 0
        %1040 = vmatpush1.bf16.msra.mxu0 %v911
        %1041 = vmatprep.subr.bf16.mxu0 0
        %1042 = vmatpush1.bf16.msra.mxu0 %v912
        %1043 = vmatprep.subr.bf16.mxu0 0
        %1044 = vmatpush1.bf16.msra.mxu0 %v913
        %1045 = vmatprep.subr.bf16.mxu0 0
        %1046 = vmatpush1.bf16.msra.mxu0 %v914
        %1047 = vmatprep.subr.bf16.mxu0 0
        %1048 = vmatpush1.bf16.msra.mxu0 %v915
        %1049 = vmatprep.subr.bf16.mxu0 0
        %1050 = vmatpush1.bf16.msra.mxu0 %v916
        %1051 = vmatprep.subr.bf16.mxu0 0
        %1052 = vmatpush1.bf16.msra.mxu0 %v917
        %1053 = vmatprep.subr.bf16.mxu0 0
        %1054 = vmatpush1.bf16.msra.mxu0 %v918
        %1055 = vmatprep.subr.bf16.mxu0 0
        %1056 = vmatpush1.bf16.msra.mxu0 %v919
        %1057 = vmatprep.subr.bf16.mxu0 0
        %1058 = vmatpush1.bf16.msra.mxu0 %v920
        %1059 = vmatprep.subr.bf16.mxu0 0
        %1060 = vmatpush1.bf16.msra.mxu0 %v921
        %1061 = vmatprep.subr.bf16.mxu0 0
        %1062 = vmatpush1.bf16.msra.mxu0 %v922
        %1063 = vmatprep.subr.bf16.mxu0 0
        %1064 = vmatpush1.bf16.msra.mxu0 %v923
        %1065 = vmatprep.subr.bf16.mxu0 0
        %1066 = vmatpush1.bf16.msra.mxu0 %v924
        %1067 = vmatprep.subr.bf16.mxu0 0
        %1068 = vmatpush1.bf16.msra.mxu0 %v925
        %1069 = vmatprep.subr.bf16.mxu0 0
        %1070 = vmatpush1.bf16.msra.mxu0 %v926
        %1071 = vmatprep.mubr.bf16.mxu0 %v508
        %1072 = vmatmul.mubr.bf16.gmra.mrb[0].mxu0 %v507
        %v1073 = vpop.f32.mrb[0].mxu0
        %v1074 = vadd.f32 0.0, %v1073
        %v1075 = vpop.f32.mrb[0].mxu0
        %v1076 = vpop.f32.mrb[0].mxu0
        %v1077 = vadd.f32 0.0, %v1076
        %v1078 = vpop.f32.mrb[0].mxu0
        %1079 = vmatprep.mubr.bf16.mxu0 %v516
        %1080 = vmatmul.mubr.bf16.gmra.mrb[0].mxu0 %v515
        %v1081 = vpop.f32.mrb[0].mxu0
        %v1082 = vadd.f32 0.0, %v1081
        %v1083 = vpop.f32.mrb[0].mxu0
        %v1084 = vpop.f32.mrb[0].mxu0
        %v1085 = vadd.f32 0.0, %v1084
        %v1086 = vpop.f32.mrb[0].mxu0
        %1087 = vdwg.mxu0
        %1088 = vmatprep.subr.bf16.mxu0 0
        %1089 = vmatpush1.bf16.msra.mxu0 %v927
        %1090 = vmatprep.subr.bf16.mxu0 0
        %1091 = vmatpush1.bf16.msra.mxu0 %v928
        %1092 = vmatprep.subr.bf16.mxu0 0
        %1093 = vmatpush1.bf16.msra.mxu0 %v929
        %1094 = vmatprep.subr.bf16.mxu0 0
        %1095 = vmatpush1.bf16.msra.mxu0 %v930
        %1096 = vmatprep.subr.bf16.mxu0 0
        %1097 = vmatpush1.bf16.msra.mxu0 %v931
        %1098 = vmatprep.subr.bf16.mxu0 0
        %1099 = vmatpush1.bf16.msra.mxu0 %v932
        %1100 = vmatprep.subr.bf16.mxu0 0
        %1101 = vmatpush1.bf16.msra.mxu0 %v933
        %1102 = vmatprep.subr.bf16.mxu0 0
        %1103 = vmatpush1.bf16.msra.mxu0 %v934
        %1104 = vmatprep.subr.bf16.mxu0 0
        %1105 = vmatpush1.bf16.msra.mxu0 %v935
        %1106 = vmatprep.subr.bf16.mxu0 0
        %1107 = vmatpush1.bf16.msra.mxu0 %v936
        %1108 = vmatprep.subr.bf16.mxu0 0
        %1109 = vmatpush1.bf16.msra.mxu0 %v937
        %1110 = vmatprep.subr.bf16.mxu0 0
        %1111 = vmatpush1.bf16.msra.mxu0 %v938
        %1112 = vmatprep.subr.bf16.mxu0 0
        %1113 = vmatpush1.bf16.msra.mxu0 %v939
        %1114 = vmatprep.subr.bf16.mxu0 0
        %1115 = vmatpush1.bf16.msra.mxu0 %v940
        %1116 = vmatprep.subr.bf16.mxu0 0
        %1117 = vmatpush1.bf16.msra.mxu0 %v941
        %1118 = vmatprep.subr.bf16.mxu0 0
        %1119 = vmatpush1.bf16.msra.mxu0 %v942
        %1120 = vmatprep.mubr.bf16.mxu0 %v510
        %1121 = vmatmul.mubr.bf16.gmra.mrb[0].mxu0 %v509
        %v1122 = vpop.f32.mrb[0].mxu0
        %v1123 = vadd.f32 %v1074, %v1122
        %v1124 = vpop.f32.mrb[0].mxu0
        %v1125 = vpop.f32.mrb[0].mxu0
        %v1126 = vadd.f32 %v1077, %v1125
        %v1127 = vpop.f32.mrb[0].mxu0
        %1128 = vmatprep.mubr.bf16.mxu0 %v518
        %1129 = vmatmul.mubr.bf16.gmra.mrb[0].mxu0 %v517
        %v1130 = vpop.f32.mrb[0].mxu0
        %v1131 = vadd.f32 %v1082, %v1130
        %v1132 = vpop.f32.mrb[0].mxu0
        %v1133 = vpop.f32.mrb[0].mxu0
        %v1134 = vadd.f32 %v1085, %v1133
        %v1135 = vpop.f32.mrb[0].mxu0
        %1136 = vdwg.mxu0
        %1137 = vmatprep.subr.bf16.mxu0 0
        %1138 = vmatpush1.bf16.msra.mxu0 %v943
        %1139 = vmatprep.subr.bf16.mxu0 0
        %1140 = vmatpush1.bf16.msra.mxu0 %v944
        %1141 = vmatprep.subr.bf16.mxu0 0
        %1142 = vmatpush1.bf16.msra.mxu0 %v945
        %1143 = vmatprep.subr.bf16.mxu0 0
        %1144 = vmatpush1.bf16.msra.mxu0 %v946
        %1145 = vmatprep.subr.bf16.mxu0 0
        %1146 = vmatpush1.bf16.msra.mxu0 %v947
        %1147 = vmatprep.subr.bf16.mxu0 0
        %1148 = vmatpush1.bf16.msra.mxu0 %v948
        %1149 = vmatprep.subr.bf16.mxu0 0
        %1150 = vmatpush1.bf16.msra.mxu0 %v949
        %1151 = vmatprep.subr.bf16.mxu0 0
        %1152 = vmatpush1.bf16.msra.mxu0 %v950
        %1153 = vmatprep.subr.bf16.mxu0 0
        %1154 = vmatpush1.bf16.msra.mxu0 %v951
        %1155 = vmatprep.subr.bf16.mxu0 0
        %1156 = vmatpush1.bf16.msra.mxu0 %v952
        %1157 = vmatprep.subr.bf16.mxu0 0
        %1158 = vmatpush1.bf16.msra.mxu0 %v953
        %1159 = vmatprep.subr.bf16.mxu0 0
        %1160 = vmatpush1.bf16.msra.mxu0 %v954
        %1161 = vmatprep.subr.bf16.mxu0 0
        %1162 = vmatpush1.bf16.msra.mxu0 %v955
        %1163 = vmatprep.subr.bf16.mxu0 0
        %1164 = vmatpush1.bf16.msra.mxu0 %v956
        %1165 = vmatprep.subr.bf16.mxu0 0
        %1166 = vmatpush1.bf16.msra.mxu0 %v957
        %1167 = vmatprep.subr.bf16.mxu0 0
        %1168 = vmatpush1.bf16.msra.mxu0 %v958
        %1169 = vmatprep.mubr.bf16.mxu0 %v512
        %1170 = vmatmul.mubr.bf16.gmra.mrb[0].mxu0 %v511
        %v1171 = vpop.f32.mrb[0].mxu0
        %v1172 = vadd.f32 %v1123, %v1171
        %v1173 = vpop.f32.mrb[0].mxu0
        %v1174 = vpop.f32.mrb[0].mxu0
        %v1175 = vadd.f32 %v1126, %v1174
        %v1176 = vpop.f32.mrb[0].mxu0
        %1177 = vmatprep.mubr.bf16.mxu0 %v520
        %1178 = vmatmul.mubr.bf16.gmra.mrb[0].mxu0 %v519
        %v1179 = vpop.f32.mrb[0].mxu0
        %v1180 = vadd.f32 %v1131, %v1179
        %v1181 = vpop.f32.mrb[0].mxu0
        %v1182 = vpop.f32.mrb[0].mxu0
        %v1183 = vadd.f32 %v1134, %v1182
        %v1184 = vpop.f32.mrb[0].mxu0
        %1185 = vdwg.mxu0
        %1186 = vmatprep.subr.bf16.mxu0 0
        %1187 = vmatpush1.bf16.msra.mxu0 %v959
        %1188 = vmatprep.subr.bf16.mxu0 0
        %1189 = vmatpush1.bf16.msra.mxu0 %v960
        %1190 = vmatprep.subr.bf16.mxu0 0
        %1191 = vmatpush1.bf16.msra.mxu0 %v961
        %1192 = vmatprep.subr.bf16.mxu0 0
        %1193 = vmatpush1.bf16.msra.mxu0 %v962
        %1194 = vmatprep.subr.bf16.mxu0 0
        %1195 = vmatpush1.bf16.msra.mxu0 %v963
        %1196 = vmatprep.subr.bf16.mxu0 0
        %1197 = vmatpush1.bf16.msra.mxu0 %v964
        %1198 = vmatprep.subr.bf16.mxu0 0
        %1199 = vmatpush1.bf16.msra.mxu0 %v965
        %1200 = vmatprep.subr.bf16.mxu0 0
        %1201 = vmatpush1.bf16.msra.mxu0 %v966
        %1202 = vmatprep.subr.bf16.mxu0 0
        %1203 = vmatpush1.bf16.msra.mxu0 %v967
        %1204 = vmatprep.subr.bf16.mxu0 0
        %1205 = vmatpush1.bf16.msra.mxu0 %v968
        %1206 = vmatprep.subr.bf16.mxu0 0
        %1207 = vmatpush1.bf16.msra.mxu0 %v969
        %1208 = vmatprep.subr.bf16.mxu0 0
        %1209 = vmatpush1.bf16.msra.mxu0 %v970
        %1210 = vmatprep.subr.bf16.mxu0 0
        %1211 = vmatpush1.bf16.msra.mxu0 %v971
        %1212 = vmatprep.subr.bf16.mxu0 0
        %1213 = vmatpush1.bf16.msra.mxu0 %v972
        %1214 = vmatprep.subr.bf16.mxu0 0
        %1215 = vmatpush1.bf16.msra.mxu0 %v973
        %1216 = vmatprep.subr.bf16.mxu0 0
        %1217 = vmatpush1.bf16.msra.mxu0 %v974
        %1218 = vmatprep.mubr.bf16.mxu0 %v514
        %1219 = vmatmul.mubr.bf16.gmra.mrb[0].mxu0 %v513
        %v1220 = vpop.f32.mrb[0].mxu0
        %v1221 = vadd.f32 %v1172, %v1220
        %v1222 = vpop.f32.mrb[0].mxu0
        %v1223 = vpop.f32.mrb[0].mxu0
        %v1224 = vadd.f32 %v1175, %v1223
        %v1225 = vpop.f32.mrb[0].mxu0
        %1226 = vmatprep.mubr.bf16.mxu0 %v522
        %1227 = vmatmul.mubr.bf16.gmra.mrb[0].mxu0 %v521
        %v1228 = vpop.f32.mrb[0].mxu0
        %v1229 = vadd.f32 %v1180, %v1228
        %v1230 = vpop.f32.mrb[0].mxu0
        %v1231 = vpop.f32.mrb[0].mxu0
        %v1232 = vadd.f32 %v1183, %v1231
        %v1233 = vpop.f32.mrb[0].mxu0
        %1234 = vdwg.mxu0
        %v1235 = vadd.f32 %v523, %v1221
        %v1236 = vadd.f32 %v524, %v1224
        %v1237 = vadd.f32 %v525, %v1229
        %v1238 = vadd.f32 %v526, %v1232
        %1239 = vst [vmem:[#allocation2] sm:$0xff] %v1235
        %1240 = vst [vmem:[#allocation2 + $0x8] sm:$0xff] %v1236
        %1241 = vst [vmem:[#allocation2 + $0x10] sm:$0xff] %v1237
        %1242 = vst [vmem:[#allocation2 + $0x18] sm:$0xff] %v1238
        // Predicated region
        $region69: #{tpu_custom_call.1} parent=47 // pred_check
          %p1243 = pneg %p491
        $region70: #{tpu_custom_call.1} parent=47 // pred_check_branch
          %1245 = sbr.rel (%p1243) target = $region72
        $region71: #{tpu_custom_call.1} parent=47 // pred_region
          %v1246 = vld [vmem:[#allocation2] sm:$0xff]
          %v1247 = vld [vmem:[#allocation2 + $0x8] sm:$0xff]
          %v1248 = vld [vmem:[#allocation2 + $0x10] sm:$0xff]
          %v1249 = vld [vmem:[#allocation2 + $0x18] sm:$0xff]
          %v1250 = vmul.f32 %v1246, 0.003921569
          %v1251 = vmul.f32 %v1247, 0.003921569
          %v1252 = vmul.f32 %v1248, 0.003921569
          %v1253 = vmul.f32 %v1249, 0.003921569
          %v1254 = vld [vmem:[%s482] sm:$0x1]
          %v1256 = vlaneseq
          %v1257 = vshrl.u32 %v1256, 7
          %v1258 = vsub.s32 0, %v1257
          %v1259 = vrot.slane %v1254, %v1258
          %v1261 = vadd.f32 %v1250, %v1259
          %v1262 = vadd.f32 %v1251, %v1259
          %v1263 = vadd.f32 %v1252, %v1259
          %v1264 = vadd.f32 %v1253, %v1259
          %v1265 = vpack.c.bf16 %v1262, %v1261
          %v1266 = vpack.c.bf16 %v1264, %v1263
          %v1267 = vld [vmem:[%s414] sm:$0xf]
          %v1268 = vld [vmem:[%s414 + $0x4] sm:$0xf]
          %v1269 = vld [vmem:[%s414 + $0x8] sm:$0xf]
          %v1270 = vld [vmem:[%s414 + $0xc] sm:$0xf]
          %v1271 = vld [vmem:[%s414 + $0x10] sm:$0xf]
          %v1272 = vld [vmem:[%s414 + $0x14] sm:$0xf]
          %v1273 = vld [vmem:[%s414 + $0x18] sm:$0xf]
          %v1274 = vld [vmem:[%s414 + $0x1c] sm:$0xf]
          %v1275 = vld [vmem:[%s414 + $0x20] sm:$0xf]
          %v1276 = vld [vmem:[%s414 + $0x24] sm:$0xf]
          %v1277 = vld [vmem:[%s414 + $0x28] sm:$0xf]
          %v1278 = vld [vmem:[%s414 + $0x2c] sm:$0xf]
          %v1279 = vld [vmem:[%s414 + $0x30] sm:$0xf]
          %v1280 = vld [vmem:[%s414 + $0x34] sm:$0xf]
          %v1281 = vld [vmem:[%s414 + $0x38] sm:$0xf]
          %v1282 = vld [vmem:[%s414 + $0x3c] sm:$0xf]
          %v1283 = vld [vmem:[%s485] sm:$0x1]
          %v1285 = vlaneseq
          %v1286 = vshrl.u32 %v1285, 7
          %v1287 = vsub.s32 0, %v1286
          %v1288 = vrot.slane %v1283, %v1287
          %v1306 = vunpack.c.l.b16 %v1267
          %v1307 = vunpack.c.l.b16 %v1268
          %v1308 = vunpack.c.l.b16 %v1269
          %v1309 = vunpack.c.l.b16 %v1270
          %v1310 = vunpack.c.l.b16 %v1271
          %v1311 = vunpack.c.l.b16 %v1272
          %v1312 = vunpack.c.l.b16 %v1273
          %v1313 = vunpack.c.l.b16 %v1274
          %v1314 = vunpack.c.l.b16 %v1275
          %v1315 = vunpack.c.l.b16 %v1276
          %v1316 = vunpack.c.l.b16 %v1277
          %v1317 = vunpack.c.l.b16 %v1278
          %v1318 = vunpack.c.l.b16 %v1279
          %v1319 = vunpack.c.l.b16 %v1280
          %v1320 = vunpack.c.l.b16 %v1281
          %v1321 = vunpack.c.l.b16 %v1282
          %v1322 = vpack.c.b16 %v1307, %v1306
          %v1323 = vpack.c.b16 %v1309, %v1308
          %v1324 = vpack.c.b16 %v1311, %v1310
          %v1325 = vpack.c.b16 %v1313, %v1312
          %v1326 = vpack.c.b16 %v1315, %v1314
          %v1327 = vpack.c.b16 %v1317, %v1316
          %v1328 = vpack.c.b16 %v1319, %v1318
          %v1329 = vpack.c.b16 %v1321, %v1320
          %1338 = vmatprep.subr.bf16.mxu0 0
          %1339 = vmatpush1.bf16.msra.mxu0 %v1322
          %1340 = vmatprep.subr.bf16.mxu0 0
          %1341 = vmatpush1.bf16.msra.mxu0 %v1323
          %1342 = vmatprep.subr.bf16.mxu0 0
          %1343 = vmatpush1.bf16.msra.mxu0 %v1324
          %1344 = vmatprep.subr.bf16.mxu0 0
          %1345 = vmatpush1.bf16.msra.mxu0 %v1325
          %1346 = vmatprep.subr.bf16.mxu0 0
          %1347 = vmatpush1.bf16.msra.mxu0 %v1326
          %1348 = vmatprep.subr.bf16.mxu0 0
          %1349 = vmatpush1.bf16.msra.mxu0 %v1327
          %1350 = vmatprep.subr.bf16.mxu0 0
          %1351 = vmatpush1.bf16.msra.mxu0 %v1328
          %1352 = vmatprep.subr.bf16.mxu0 0
          %1353 = vmatpush1.bf16.msra.mxu0 %v1329
          %1354 = vmatprep.subr.bf16.mxu0 0
          %1355 = vmatpush1.bf16.msra.mxu0 0
          %1356 = vmatprep.subr.bf16.mxu0 0
          %1357 = vmatpush1.bf16.msra.mxu0 0
          %1358 = vmatprep.subr.bf16.mxu0 0
          %1359 = vmatpush1.bf16.msra.mxu0 0
          %1360 = vmatprep.subr.bf16.mxu0 0
          %1361 = vmatpush1.bf16.msra.mxu0 0
          %1362 = vmatprep.subr.bf16.mxu0 0
          %1363 = vmatpush1.bf16.msra.mxu0 0
          %1364 = vmatprep.subr.bf16.mxu0 0
          %1365 = vmatpush1.bf16.msra.mxu0 0
          %1366 = vmatprep.subr.bf16.mxu0 0
          %1367 = vmatpush1.bf16.msra.mxu0 0
          %1368 = vmatprep.subr.bf16.mxu0 0
          %1369 = vmatpush1.bf16.msra.mxu0 0
          %1370 = vmatprep.mubr.bf16.mxu0 0
          %1371 = vmatmul.mubr.bf16.gmra.mrb[0].mxu0 %v1265
          %v1372 = vpop.f32.mrb[0].mxu0
          %v1373 = vadd.f32 %v1288, %v1372
          %v1374 = vpop.f32.mrb[0].mxu0
          %v1375 = vpop.f32.mrb[0].mxu0
          %v1376 = vadd.f32 %v1288, %v1375
          %v1377 = vpop.f32.mrb[0].mxu0
          %1378 = vmatprep.mubr.bf16.mxu0 0
          %1379 = vmatmul.mubr.bf16.gmra.mrb[0].mxu0 %v1266
          %v1380 = vpop.f32.mrb[0].mxu0
          %v1381 = vadd.f32 %v1288, %v1380
          %v1382 = vpop.f32.mrb[0].mxu0
          %v1383 = vpop.f32.mrb[0].mxu0
          %v1384 = vadd.f32 %v1288, %v1383
          %v1385 = vpop.f32.mrb[0].mxu0
          %1386 = vdwg.mxu0
          %v1387 = vmax.f32 %v1373, 0.0
          %v1388 = vmax.f32 %v1376, 0.0
          %v1389 = vmax.f32 %v1381, 0.0
          %v1390 = vmax.f32 %v1384, 0.0
          %v1391 = vpack.c.bf16 %v1388, %v1387
          %v1392 = vpack.c.bf16 %v1390, %v1389
          %v1393 = vld [vmem:[%s423] sm:$0xf]
          %v1394 = vld [vmem:[%s423 + $0x4] sm:$0xf]
          %v1395 = vld [vmem:[%s423 + $0x8] sm:$0xf]
          %v1396 = vld [vmem:[%s423 + $0xc] sm:$0xf]
          %v1397 = vld [vmem:[%s423 + $0x10] sm:$0xf]
          %v1398 = vld [vmem:[%s423 + $0x14] sm:$0xf]
          %v1399 = vld [vmem:[%s423 + $0x18] sm:$0xf]
          %v1400 = vld [vmem:[%s423 + $0x1c] sm:$0xf]
          %v1401 = vld [vmem:[%s423 + $0x20] sm:$0xf]
          %v1402 = vld [vmem:[%s423 + $0x24] sm:$0xf]
          %v1403 = vld [vmem:[%s423 + $0x28] sm:$0xf]
          %v1404 = vld [vmem:[%s423 + $0x2c] sm:$0xf]
          %v1405 = vld [vmem:[%s423 + $0x30] sm:$0xf]
          %v1406 = vld [vmem:[%s423 + $0x34] sm:$0xf]
          %v1407 = vld [vmem:[%s423 + $0x38] sm:$0xf]
          %v1408 = vld [vmem:[%s423 + $0x3c] sm:$0xf]
          %v1409 = vld [vmem:[%s488] sm:$0x1]
          %v1411 = vlaneseq
          %v1412 = vshrl.u32 %v1411, 7
          %v1413 = vsub.s32 0, %v1412
          %v1414 = vrot.slane %v1409, %v1413
          %v1432 = vunpack.c.l.b16 %v1393
          %v1433 = vunpack.c.l.b16 %v1394
          %v1434 = vunpack.c.l.b16 %v1395
          %v1435 = vunpack.c.l.b16 %v1396
          %v1436 = vunpack.c.l.b16 %v1397
          %v1437 = vunpack.c.l.b16 %v1398
          %v1438 = vunpack.c.l.b16 %v1399
          %v1439 = vunpack.c.l.b16 %v1400
          %v1440 = vunpack.c.l.b16 %v1401
          %v1441 = vunpack.c.l.b16 %v1402
          %v1442 = vunpack.c.l.b16 %v1403
          %v1443 = vunpack.c.l.b16 %v1404
          %v1444 = vunpack.c.l.b16 %v1405
          %v1445 = vunpack.c.l.b16 %v1406
          %v1446 = vunpack.c.l.b16 %v1407
          %v1447 = vunpack.c.l.b16 %v1408
          %v1448 = vpack.c.b16 %v1433, %v1432
          %v1449 = vpack.c.b16 %v1435, %v1434
          %v1450 = vpack.c.b16 %v1437, %v1436
          %v1451 = vpack.c.b16 %v1439, %v1438
          %v1452 = vpack.c.b16 %v1441, %v1440
          %v1453 = vpack.c.b16 %v1443, %v1442
          %v1454 = vpack.c.b16 %v1445, %v1444
          %v1455 = vpack.c.b16 %v1447, %v1446
          %1464 = vmatprep.subr.bf16.mxu0 0
          %1465 = vmatpush1.bf16.msra.mxu0 %v1448
          %1466 = vmatprep.subr.bf16.mxu0 0
          %1467 = vmatpush1.bf16.msra.mxu0 %v1449
          %1468 = vmatprep.subr.bf16.mxu0 0
          %1469 = vmatpush1.bf16.msra.mxu0 %v1450
          %1470 = vmatprep.subr.bf16.mxu0 0
          %1471 = vmatpush1.bf16.msra.mxu0 %v1451
          %1472 = vmatprep.subr.bf16.mxu0 0
          %1473 = vmatpush1.bf16.msra.mxu0 %v1452
          %1474 = vmatprep.subr.bf16.mxu0 0
          %1475 = vmatpush1.bf16.msra.mxu0 %v1453
          %1476 = vmatprep.subr.bf16.mxu0 0
          %1477 = vmatpush1.bf16.msra.mxu0 %v1454
          %1478 = vmatprep.subr.bf16.mxu0 0
          %1479 = vmatpush1.bf16.msra.mxu0 %v1455
          %1480 = vmatprep.subr.bf16.mxu0 0
          %1481 = vmatpush1.bf16.msra.mxu0 0
          %1482 = vmatprep.subr.bf16.mxu0 0
          %1483 = vmatpush1.bf16.msra.mxu0 0
          %1484 = vmatprep.subr.bf16.mxu0 0
          %1485 = vmatpush1.bf16.msra.mxu0 0
          %1486 = vmatprep.subr.bf16.mxu0 0
          %1487 = vmatpush1.bf16.msra.mxu0 0
          %1488 = vmatprep.subr.bf16.mxu0 0
          %1489 = vmatpush1.bf16.msra.mxu0 0
          %1490 = vmatprep.subr.bf16.mxu0 0
          %1491 = vmatpush1.bf16.msra.mxu0 0
          %1492 = vmatprep.subr.bf16.mxu0 0
          %1493 = vmatpush1.bf16.msra.mxu0 0
          %1494 = vmatprep.subr.bf16.mxu0 0
          %1495 = vmatpush1.bf16.msra.mxu0 0
          %1496 = vmatprep.mubr.bf16.mxu0 0
          %1497 = vmatmul.mubr.bf16.gmra.mrb[0].mxu0 %v1391
          %v1498 = vpop.f32.mrb[0].mxu0
          %v1499 = vadd.f32 %v1414, %v1498
          %v1500 = vpop.f32.mrb[0].mxu0
          %v1501 = vpop.f32.mrb[0].mxu0
          %v1502 = vadd.f32 %v1414, %v1501
          %v1503 = vpop.f32.mrb[0].mxu0
          %1504 = vmatprep.mubr.bf16.mxu0 0
          %1505 = vmatmul.mubr.bf16.gmra.mrb[0].mxu0 %v1392
          %v1506 = vpop.f32.mrb[0].mxu0
          %v1507 = vadd.f32 %v1414, %v1506
          %v1508 = vpop.f32.mrb[0].mxu0
          %v1509 = vpop.f32.mrb[0].mxu0
          %v1510 = vadd.f32 %v1414, %v1509
          %v1511 = vpop.f32.mrb[0].mxu0
          %1512 = vdwg.mxu0
          %v1513 = vmul.f32 %v1499, %v1499
          %v1514 = vmul.f32 %v1502, %v1502
          %v1515 = vmul.f32 %v1507, %v1507
          %v1516 = vmul.f32 %v1510, %v1510
          %1517 = vadd.xlane.f32.xlu0 %v1513
          %v1518 = vpop.xlane.xlu0 %1517
          %1519 = vadd.xlane.f32.xlu0 %v1514
          %v1520 = vpop.xlane.xlu0 %1519
          %1521 = vadd.xlane.f32.xlu0 %v1515
          %v1522 = vpop.xlane.xlu0 %1521
          %1523 = vadd.xlane.f32.xlu0 %v1516
          %v1524 = vpop.xlane.xlu0 %1523
          %v1525 = vmax.f32 %v1518, 1e-24
          %v1526 = vmax.f32 %v1520, 1e-24
          %v1527 = vmax.f32 %v1522, 1e-24
          %v1528 = vmax.f32 %v1524, 1e-24
          %v1529 = vrsqrt.pop %v1525
          %v1530 = vrsqrt.pop %v1526
          %v1531 = vrsqrt.pop %v1527
          %v1532 = vrsqrt.pop %v1528
          %v1533 = vmul.f32 %v1499, %v1529
          %v1534 = vmul.f32 %v1502, %v1530
          %v1535 = vmul.f32 %v1507, %v1531
          %v1536 = vmul.f32 %v1510, %v1532
          %1537 = vst [vmem:[%s477] sm:$0xff] %v1533
          %1538 = vst [vmem:[%s477 + $0x8] sm:$0xff] %v1534
          %1539 = vst [vmem:[%s477 + $0x10] sm:$0xff] %v1535
          %1540 = vst [vmem:[%s477 + $0x18] sm:$0xff] %v1536
        $region72: #{tpu_custom_call.1} parent=47 // pred_fallthru
          _
        %s1541 = sand.u32 %s247, 1
        %s1542 = scalar_lea.sflag [#allocation5], %s1541
        %s1543 = sand.u32 %s247, 1
        %s1544 = smul.addr %s1543, 32
        %s1545 = scalar_lea.vmem [#allocation11], %s1544
        // Predicated region
        $region73: #{tpu_custom_call.1} parent=47 // pred_check
          %p1546 = pneg %p257
        $region74: #{tpu_custom_call.1} parent=47 // pred_check_branch
          %1548 = sbr.rel (%p1546) target = $region76
        $region75: #{tpu_custom_call.1} parent=47 // pred_region
          %s1549 = smul.u32 4, %s36
          %s1551 = ssub.s32 512, 512
          %1552 = vsyncadd %s1542, %s1551
          %s1553 = smul.addr %s35, 4
          %s1554 = sadd.s32 %s1549, %s1553
          %s1555 = smul.addr %s1554, 128
          %s1556 = scalar_lea.hbm %s7, %s1555
          %s1557 = sshll.u32 %s1545, 4
          %s1558 = int_to_ptr.vmem [resolvable:$true] %s1557
          %1563 = dma.vmem_to_hbm [thread:$0]  %s1558, 512, %s1556, %s1542, 128, 128, 8
        $region76: #{tpu_custom_call.1} parent=47 // pred_fallthru
          _
      $region48: #{tpu_custom_call.1} parent=5 // pred_fallthru
        _
      %p1564 = scmp.le.s32.totalorder 2, %s25
      // Predicated region
      $region77: #{tpu_custom_call.1} parent=5 // pred_check
        %p1565 = pneg %p1564
      $region78: #{tpu_custom_call.1} parent=5 // pred_check_branch
        %1567 = sbr.rel (%p1565) target = $region80
      $region79: #{tpu_custom_call.1} parent=5 // pred_region
        %s1568 = ssub.s32 %s25, 2
        // Predicated region
        $region81: #{tpu_custom_call.1} parent=79 // pred_check
          %p1569 = pneg %p263
        $region82: #{tpu_custom_call.1} parent=79 // pred_check_branch
          %1571 = sbr.rel (%p1569) target = $region84
        $region83: #{tpu_custom_call.1} parent=79 // pred_region
          %s1572 = sand.u32 %s248, 1
          %s1573 = scalar_lea.sflag [#allocation5], %s1572
          %s1574 = sand.u32 %s248, 1
          %s1575 = smul.addr %s1574, 32
          %s1576 = scalar_lea.vmem [#allocation11], %s1575
          %1577 = dma.done %s1573, 512
        $region84: #{tpu_custom_call.1} parent=79 // pred_fallthru
          _
      $region80: #{tpu_custom_call.1} parent=5 // pred_fallthru
        _
    $region6: #{tpu_custom_call.1} parent=1 // loop_footer
      %s29 = sadd.s32 1, %s25
    $region7: #{tpu_custom_call.1} parent=1 // loop_footer_branch
      %24 = sbr.rel target = $region3
    $region8: #{tpu_custom_call.1} parent=1 // loop_exit
      _
    %1578 = vsyncpa [#allocation4], 1
    %s1579 = scalar_lea.sflag [#allocation4], 1
    %1580 = vsyncpa %s1579, 1
    %1581 = vsyncpa [#allocation7], 1
    %s1582 = scalar_lea.sflag [#allocation7], 1
    %1583 = vsyncpa %s1582, 1
    %1584 = vsyncpa [#allocation10], 1
    %s1585 = scalar_lea.sflag [#allocation10], 1
    %1586 = vsyncpa %s1585, 1
    %1587 = vsyncpa [#allocation5], 1
    %s1588 = scalar_lea.sflag [#allocation5], 1
    %1589 = vsyncpa %s1588, 1

</llo_original>
